<compile_context>
chip_gen: v7x
topology: tpu7x:2x2x1
jax: 0.10.0
libtpu: 0.0.40
codegen_flags: <defaults>
</compile_context>

<pallas_src>
import functools

import jax
import jax.numpy as jnp
from jax.experimental import pallas as pl
from jax.experimental.pallas import tpu as pltpu

_BN_EPS = 1e-5
_INV_SQRT2 = 0.7071067811865476
_MASK = -1e30                      # finite "-inf": exp() underflows to exactly 0
_VMEM_LIMIT = 32 * 1024 * 1024     # conservative across v5e/v6e/v7x scoped VMEM


def _round_up(x, m):
    return -(-x // m) * m


def _pick_f_tile(F):
    # 512 lanes is the measured knee for HBM-roofline utilization; fits easily
    # inside the 32 MiB scoped-VMEM budget (v7x) with double buffering at the
    # batch sizes used here.  Raise per-chip if B stays small.
    for t in (512, 256, 128):
        if F % t == 0:
            return t
    return F   # small / odd feature counts: single tile


# ----------------------------------------------------------------------------
# Kernel 1: BatchNorm + common encoder (Linear + exact GELU), reduced over F.
# Grid: (F // F_TILE,)  -- reduction axis ("arbitrary"), [B,H] accumulator.
# ----------------------------------------------------------------------------
def _encoder_kernel(x_ref, gamma_ref, beta_ref, w1_ref, b1_ref, enc_ref, acc_ref):
    @pl.when(pl.program_id(0) == 0)
    def _init():
        acc_ref[...] = jnp.zeros_like(acc_ref)

    x = x_ref[...]                                        # [B, Ft] f32
    # BatchNorm1d (training mode: batch mean, biased variance) -- per-feature,
    # so computing it per F-tile over the full (untiled) batch is exact.
    mean = jnp.mean(x, axis=0, keepdims=True)             # [1, Ft]
    var = jnp.mean((x - mean) ** 2, axis=0, keepdims=True)
    xbn = (x - mean) * jax.lax.rsqrt(var + _BN_EPS) * gamma_ref[...] + beta_ref[...]

    # Partial Linear(num_features -> hidden): accumulate this F-tile's
    # contribution in f32 (bf16 operands -> MXU native dtype, halved HBM bytes).
    acc_ref[...] += jnp.dot(xbn.astype(jnp.bfloat16), w1_ref[...],
                            preferred_element_type=jnp.float32)

    @pl.when(pl.program_id(0) == pl.num_programs(0) - 1)
    def _finalize():
        h = acc_ref[...] + b1_ref[...]
        # exact (erf-based) GELU, matching nn.GELU() default
        enc_ref[...] = 0.5 * h * (1.0 + jax.lax.erf(h * _INV_SQRT2))


# ----------------------------------------------------------------------------
# Kernel 2: fused heads. Grid: (num_heads, F // F_TILE).
#   f == 0 : head Linear -> softmax -> probs (kept in VMEM scratch + written out)
#   all f  : rec tile = probs @ P[:, f-tile]   (lane-dense [B, F_TILE] stores)
# ----------------------------------------------------------------------------
def _heads_kernel(enc_ref, wh_ref, bh_ref, p_ref, probs_ref, rec_ref, q_ref):
    @pl.when(pl.program_id(1) == 0)
    def _softmax():
        logits = jnp.dot(enc_ref[...].astype(jnp.bfloat16), wh_ref[...],
                         preferred_element_type=jnp.float32) + bh_ref[...]
        # padded lanes carry bias == _MASK -> exp underflows to exactly 0
        m = jnp.max(logits, axis=1, keepdims=True)
        e = jnp.exp(logits - m)
        q = e * pl.reciprocal(jnp.sum(e, axis=1, keepdims=True), approx=True)
        q_ref[...] = q
        probs_ref[...] = q

    # decoder: Linear(k -> F, bias=False) with [0,1]-clipped weights; padded
    # probs lanes are 0 and padded P rows are 0, so padding is exact.
    rec_ref[...] = jnp.dot(q_ref[...].astype(jnp.bfloat16), p_ref[...],
                           preferred_element_type=jnp.float32)


# ----------------------------------------------------------------------------
# Forward wrapper
# ----------------------------------------------------------------------------
@functools.partial(jax.jit, static_argnames=("ks", "f_tile"))
def neural_admixture_forward(X, params, packed, *, ks, f_tile):
    """Full forward pass. Returns (recs_list, probs_list)."""
    B, F = X.shape
    H = params["b1"].shape[1]
    nh = len(ks)
    kpad = packed["head_b"].shape[-1]
    n_f = F // f_tile

    # ---- Kernel 1: BatchNorm + common encoder -------------------------------
    enc_cost = pl.CostEstimate(
        flops=2 * B * F * H + 8 * B * F,
        transcendentals=B * H,
        bytes_accessed=X.size * 4 + params["w1"].size * 2 + 2 * F * 4 + B * H * 4,
    )
    enc = pl.pallas_call(
        _encoder_kernel,
        out_shape=jax.ShapeDtypeStruct((B, H), jnp.float32),
        grid_spec=pltpu.PrefetchScalarGridSpec(
            num_scalar_prefetch=0,
            grid=(n_f,),
            in_specs=[
                pl.BlockSpec((B, f_tile), lambda f: (0, f)),     # X
                pl.BlockSpec((1, f_tile), lambda f: (0, f)),     # gamma
                pl.BlockSpec((1, f_tile), lambda f: (0, f)),     # beta
                pl.BlockSpec((f_tile, H), lambda f: (f, 0)),     # w1
                pl.BlockSpec((1, H), lambda f: (0, 0)),          # b1
            ],
            out_specs=pl.BlockSpec((B, H), lambda f: (0, 0)),    # enc (resident)
            scratch_shapes=[pltpu.VMEM((B, H), jnp.float32)],
        ),
        compiler_params=pltpu.CompilerParams(
            dimension_semantics=("arbitrary",),                  # F reduction
            vmem_limit_bytes=_VMEM_LIMIT,
        ),
        cost_estimate=enc_cost,
    )(X, params["gamma"], params["beta"], params["w1"], params["b1"])

    # ---- Kernel 2: fused multihead encoder + softmax + decoders -------------
    heads_cost = pl.CostEstimate(
        flops=nh * (2 * B * H * kpad + 2 * B * kpad * F),
        transcendentals=nh * B * kpad,
        bytes_accessed=(B * H * 4 + packed["head_w"].size * 2
                        + packed["head_b"].size * 4 + packed["P"].size * 2
                        + nh * B * kpad * 4 + nh * B * F * 4),
    )
    probs_stack, recs_stack = pl.pallas_call(
        _heads_kernel,
        out_shape=(
            jax.ShapeDtypeStruct((nh, B, kpad), jnp.float32),    # probs (padded)
            jax.ShapeDtypeStruct((nh, B, F), jnp.float32),       # reconstructions
        ),
        grid_spec=pltpu.PrefetchScalarGridSpec(
            num_scalar_prefetch=0,
            grid=(nh, n_f),
            in_specs=[
                pl.BlockSpec((B, H), lambda h, f: (0, 0)),               # enc
                pl.BlockSpec((None, H, kpad), lambda h, f: (h, 0, 0)),   # head_w
                pl.BlockSpec((None, 1, kpad), lambda h, f: (h, 0, 0)),   # head_b
                pl.BlockSpec((None, kpad, f_tile), lambda h, f: (h, 0, f)),  # P
            ],
            out_specs=(
                pl.BlockSpec((None, B, kpad), lambda h, f: (h, 0, 0)),
                pl.BlockSpec((None, B, f_tile), lambda h, f: (h, 0, f)),
            ),
            scratch_shapes=[pltpu.VMEM((B, kpad), jnp.float32)],
        ),
        compiler_params=pltpu.CompilerParams(
            dimension_semantics=("parallel", "arbitrary"),   # heads across TCs
            vmem_limit_bytes=_VMEM_LIMIT,
        ),
        cost_estimate=heads_cost,
    )(enc, packed["head_w"], packed["head_b"], packed["P"])

    recs = [recs_stack[i] for i in range(nh)]
    probs = [probs_stack[i, :, :k] for i, k in enumerate(ks)]
    return recs, probs


# ----------------------------------------------------------------------------
# Deterministic parameter construction (matches __init__ shapes)
# ----------------------------------------------------------------------------
def init_params(key, num_features, hidden_size, ks):
    n_heads = len(ks)
    keys = jax.random.split(key, 2 + 3 * n_heads)
    # BatchNorm1d affine params (PyTorch default init: gamma=1, beta=0).
    gamma = jnp.ones((1, num_features), jnp.float32)
    beta = jnp.zeros((1, num_features), jnp.float32)
    # common encoder Linear(num_features, hidden_size), stored as [F, H] (bf16)
    bound1 = num_features ** -0.5
    w1 = jax.random.uniform(keys[0], (num_features, hidden_size), jnp.float32,
                            -bound1, bound1).astype(jnp.bfloat16)
    b1 = jax.random.uniform(keys[1], (1, hidden_size), jnp.float32, -bound1, bound1)
    head_w, head_b, P = [], [], []
    boundh = hidden_size ** -0.5
    for i, k in enumerate(ks):
        kw, kb, kp_ = keys[2 + 3 * i], keys[3 + 3 * i], keys[4 + 3 * i]
        # multihead encoder Linear(hidden_size, k), stored as [H, k]
        head_w.append(jax.random.uniform(kw, (hidden_size, k), jnp.float32,
                                         -boundh, boundh).astype(jnp.bfloat16))
        head_b.append(jax.random.uniform(kb, (1, k), jnp.float32, -boundh, boundh))
        # decoder Linear(k, num_features, bias=False): weight [F, k] in torch,
        # stored here transposed as [k, F], clipped to [0,1] (ZeroOneClipper).
        boundd = k ** -0.5
        pw = jax.random.uniform(kp_, (k, num_features), jnp.float32, -boundd, boundd)
        P.append(jnp.clip(pw, 0.0, 1.0).astype(jnp.bfloat16))
    return dict(gamma=gamma, beta=beta, w1=w1, b1=b1,
                head_w=tuple(head_w), head_b=tuple(head_b), P=tuple(P))


def prepare_packed(params, ks):
    """Pad each head's k to a common multiple of 8 and stack along a head axis.

    Padded bias lanes get a large negative value (-> exact zero softmax probs)
    and padded P rows are zero, so padding does not change the forward result.
    Done once, outside the training step.
    """
    kpad = max(8, _round_up(max(ks), 8))
    whs, bhs, ps = [], [], []
    for i, k in enumerate(ks):
        pad = kpad - k
        whs.append(jnp.pad(params["head_w"][i], ((0, 0), (0, pad))))
        bhs.append(jnp.pad(params["head_b"][i], ((0, 0), (0, pad)),
                           constant_values=_MASK))
        ps.append(jnp.pad(params["P"][i], ((0, pad), (0, 0))))
    return dict(head_w=jnp.stack(whs),   # [nh, H, kpad]  bf16
                head_b=jnp.stack(bhs),   # [nh, 1, kpad]  f32
                P=jnp.stack(ps))         # [nh, kpad, F]  bf16


# ----------------------------------------------------------------------------
# Pure-JAX f32 reference (same stored weights) for a silent sanity check
# ----------------------------------------------------------------------------
def reference_forward(X, params, ks):
    hp = jax.lax.Precision.HIGHEST
    mean = jnp.mean(X, axis=0, keepdims=True)
    var = jnp.mean((X - mean) ** 2, axis=0, keepdims=True)
    xbn = (X - mean) / jnp.sqrt(var + _BN_EPS) * params["gamma"] + params["beta"]
    h = jnp.dot(xbn, params["w1"].astype(jnp.float32), precision=hp) + params["b1"]
    enc = jax.nn.gelu(h, approximate=False)
    recs, probs = [], []
    for i, _ in enumerate(ks):
        logits = (jnp.dot(enc, params["head_w"][i].astype(jnp.float32), precision=hp)
                  + params["head_b"][i])
        p = jax.nn.softmax(logits, axis=1)
        probs.append(p)
        recs.append(jnp.dot(p, params["P"][i].astype(jnp.float32), precision=hp))
    return recs, probs


if __name__ == "__main__":
    # Small shapes, but large enough to exercise multi-tile F reduction
    # (F_TILE = 512 -> 2 feature tiles) and the multi-head fusion.
    B, num_features, hidden_size = 16, 1024, 64
    ks = (3, 4)

    key = jax.random.PRNGKey(0)
    kx, kp = jax.random.split(key)
    # Synthetic genotype-like data (values in {0, 0.5, 1})
    X = jax.random.randint(kx, (B, num_features), 0, 3).astype(jnp.float32) / 2.0
    params = init_params(kp, num_features, hidden_size, ks)
    packed = prepare_packed(params, ks)

    f_tile = _pick_f_tile(num_features)
    recs, probs = neural_admixture_forward(X, params, packed, ks=ks, f_tile=f_tile)
    jax.block_until_ready(recs)
    jax.block_until_ready(probs)

    # Sanity check against a pure-JAX f32 reference using the same weights.
    # (Kernel uses bf16 matmul operands with f32 accumulation + approx
    # reciprocal, hence the relaxed tolerance.)
    recs_ref, probs_ref = reference_forward(X, params, ks)
    for a, b in zip(recs, recs_ref):
        assert a.shape == b.shape
        assert jnp.allclose(a, b, atol=2e-2, rtol=2e-2), float(jnp.max(jnp.abs(a - b)))
    for a, b in zip(probs, probs_ref):
        assert a.shape == b.shape
        assert jnp.allclose(a, b, atol=2e-2, rtol=2e-2), float(jnp.max(jnp.abs(a - b)))

    print("KERNEL_OK")
</pallas_src>

<mosaic_0001>
module attributes {stable_mosaic.version = 11 : i64} {
  func.func @_encoder_kernel(%arg0: i32, %arg1: memref<16x512xf32, #tpu.memory_space<vmem>>, %arg2: memref<1x512xf32, #tpu.memory_space<vmem>>, %arg3: memref<1x512xf32, #tpu.memory_space<vmem>>, %arg4: memref<512x64xbf16, #tpu.memory_space<vmem>>, %arg5: memref<1x64xf32, #tpu.memory_space<vmem>>, %arg6: memref<16x64xf32, #tpu.memory_space<vmem>>, %arg7: memref<16x64xf32, #tpu.memory_space<vmem>>) attributes {dimension_semantics = [#tpu.dimension_semantics<arbitrary>], iteration_bounds = array<i64: 2>, scalar_prefetch = 0 : i64, scratch_operands = 1 : i64, tpu.core_type = #tpu.core_type<tc>, window_params = [{transform_indices = @transform_0, window_bounds = array<i64: 16, 512>}, {transform_indices = @transform_1, window_bounds = array<i64: 1, 512>}, {transform_indices = @transform_2, window_bounds = array<i64: 1, 512>}, {transform_indices = @transform_3, window_bounds = array<i64: 512, 64>}, {pipeline_mode = #tpu.pipeline_mode<synchronous>, transform_indices = @transform_4, window_bounds = array<i64: 1, 64>}, {pipeline_mode = #tpu.pipeline_mode<synchronous>, transform_indices = @transform_5, window_bounds = array<i64: 16, 64>}]} {
    %c0_i32 = arith.constant 0 : i32
    %0 = arith.cmpi eq, %arg0, %c0_i32 : i32
    %1 = arith.extui %0 : i1 to i32
    %c0_i32_0 = arith.constant 0 : i32
    %2 = arith.cmpi ne, %1, %c0_i32_0 : i32
    scf.if %2 {
      %cst_18 = arith.constant 0.000000e+00 : f32
      %37 = vector.broadcast %cst_18 : f32 to vector<16x64xf32>
      %c0_19 = arith.constant 0 : index
      %c0_20 = arith.constant 0 : index
      %38 = vector.load %arg7[%c0_19, %c0_20] : memref<16x64xf32, #tpu.memory_space<vmem>>, vector<16x64xf32>
      tpu.vector_store %arg7[%c0_19, %c0_20], %37 {strides = array<i32>} : memref<16x64xf32, #tpu.memory_space<vmem>>, vector<16x64xf32>,
    } else {
    }
    %c0 = arith.constant 0 : index
    %c0_1 = arith.constant 0 : index
    %3 = vector.load %arg1[%c0, %c0_1] : memref<16x512xf32, #tpu.memory_space<vmem>>, vector<16x512xf32>
    %cst = arith.constant dense<0.000000e+00> : vector<512xf32>
    %4 = vector.multi_reduction <add>, %3, %cst [0] : vector<16x512xf32> to vector<512xf32>
    %5 = vector.shape_cast %4 : vector<512xf32> to vector<1x512xf32>
    %cst_2 = arith.constant 1.600000e+01 : f32
    %6 = vector.broadcast %cst_2 : f32 to vector<1x512xf32>
    %7 = arith.divf %5, %6 : vector<1x512xf32>
    %8 = vector.broadcast %7 : vector<1x512xf32> to vector<16x512xf32>
    %9 = arith.subf %3, %8 : vector<16x512xf32>
    %10 = arith.mulf %9, %9 : vector<16x512xf32>
    %cst_3 = arith.constant dense<0.000000e+00> : vector<512xf32>
    %11 = vector.multi_reduction <add>, %10, %cst_3 [0] : vector<16x512xf32> to vector<512xf32>
    %12 = vector.shape_cast %11 : vector<512xf32> to vector<1x512xf32>
    %cst_4 = arith.constant 1.600000e+01 : f32
    %13 = vector.broadcast %cst_4 : f32 to vector<1x512xf32>
    %14 = arith.divf %12, %13 : vector<1x512xf32>
    %15 = vector.broadcast %7 : vector<1x512xf32> to vector<16x512xf32>
    %16 = arith.subf %3, %15 : vector<16x512xf32>
    %cst_5 = arith.constant 9.99999974E-6 : f32
    %17 = vector.broadcast %cst_5 : f32 to vector<1x512xf32>
    %18 = arith.addf %14, %17 : vector<1x512xf32>
    %19 = math.rsqrt %18 : vector<1x512xf32>
    %20 = vector.broadcast %19 : vector<1x512xf32> to vector<16x512xf32>
    %21 = arith.mulf %16, %20 : vector<16x512xf32>
    %c0_6 = arith.constant 0 : index
    %c0_7 = arith.constant 0 : index
    %22 = vector.load %arg2[%c0_6, %c0_7] : memref<1x512xf32, #tpu.memory_space<vmem>>, vector<1x512xf32>
    %23 = vector.broadcast %22 : vector<1x512xf32> to vector<16x512xf32>
    %24 = arith.mulf %21, %23 : vector<16x512xf32>
    %c0_8 = arith.constant 0 : index
    %c0_9 = arith.constant 0 : index
    %25 = vector.load %arg3[%c0_8, %c0_9] : memref<1x512xf32, #tpu.memory_space<vmem>>, vector<1x512xf32>
    %26 = vector.broadcast %25 : vector<1x512xf32> to vector<16x512xf32>
    %27 = arith.addf %24, %26 : vector<16x512xf32>
    %c0_10 = arith.constant 0 : index
    %c0_11 = arith.constant 0 : index
    %28 = vector.load %arg7[%c0_10, %c0_11] : memref<16x64xf32, #tpu.memory_space<vmem>>, vector<16x64xf32>
    %29 = arith.truncf %27 : vector<16x512xf32> to vector<16x512xbf16>
    %c0_12 = arith.constant 0 : index
    %c0_13 = arith.constant 0 : index
    %30 = vector.load %arg4[%c0_12, %c0_13] : memref<512x64xbf16, #tpu.memory_space<vmem>>, vector<512x64xbf16>
    %cst_14 = arith.constant dense<0.000000e+00> : vector<16x64xf32>
    %31 = tpu.matmul %29, %30, %cst_14 {dimension_numbers = #tpu.dot_dimension_numbers<[1], [0], [0], [1], [0, 0, 1, 1], [], []>} : vector<16x512xbf16>, vector<512x64xbf16>, vector<16x64xf32> -> vector<16x64xf32>
    %32 = arith.addf %28, %31 : vector<16x64xf32>
    %c0_15 = arith.constant 0 : index
    %c0_16 = arith.constant 0 : index
    %33 = vector.load %arg7[%c0_15, %c0_16] : memref<16x64xf32, #tpu.memory_space<vmem>>, vector<16x64xf32>
    tpu.vector_store %arg7[%c0_15, %c0_16], %32 {strides = array<i32>} : memref<16x64xf32, #tpu.memory_space<vmem>>, vector<16x64xf32>,
    %c1_i32 = arith.constant 1 : i32
    %34 = arith.cmpi eq, %arg0, %c1_i32 : i32
    %35 = arith.extui %34 : i1 to i32
    %c0_i32_17 = arith.constant 0 : i32
    %36 = arith.cmpi ne, %35, %c0_i32_17 : i32
    scf.if %36 {
      %c0_18 = arith.constant 0 : index
      %c0_19 = arith.constant 0 : index
      %37 = vector.load %arg7[%c0_18, %c0_19] : memref<16x64xf32, #tpu.memory_space<vmem>>, vector<16x64xf32>
      %c0_20 = arith.constant 0 : index
      %c0_21 = arith.constant 0 : index
      %38 = vector.load %arg5[%c0_20, %c0_21] : memref<1x64xf32, #tpu.memory_space<vmem>>, vector<1x64xf32>
      %39 = vector.broadcast %38 : vector<1x64xf32> to vector<16x64xf32>
      %40 = arith.addf %37, %39 : vector<16x64xf32>
      %cst_22 = arith.constant 5.000000e-01 : f32
      %41 = vector.broadcast %cst_22 : f32 to vector<16x64xf32>
      %42 = arith.mulf %41, %40 : vector<16x64xf32>
      %cst_23 = arith.constant 0.707106769 : f32
      %43 = vector.broadcast %cst_23 : f32 to vector<16x64xf32>
      %44 = arith.mulf %40, %43 : vector<16x64xf32>
      %45 = math.erf %44 : vector<16x64xf32>
      %cst_24 = arith.constant 1.000000e+00 : f32
      %46 = vector.broadcast %cst_24 : f32 to vector<16x64xf32>
      %47 = arith.addf %46, %45 : vector<16x64xf32>
      %48 = arith.mulf %42, %47 : vector<16x64xf32>
      %c0_25 = arith.constant 0 : index
      %c0_26 = arith.constant 0 : index
      %49 = vector.load %arg6[%c0_25, %c0_26] : memref<16x64xf32, #tpu.memory_space<vmem>>, vector<16x64xf32>
      tpu.vector_store %arg6[%c0_25, %c0_26], %48 {strides = array<i32>} : memref<16x64xf32, #tpu.memory_space<vmem>>, vector<16x64xf32>,
    } else {
    }
    return
  }
  func.func @transform_0(%arg0: i32) -> (i32, i32) {
    %c0_i32 = arith.constant 0 : i32
    %c0_i32_0 = arith.constant 0 : i32
    return %c0_i32, %arg0 : i32, i32
  }
  func.func @transform_1(%arg0: i32) -> (i32, i32) {
    %c0_i32 = arith.constant 0 : i32
    %c0_i32_0 = arith.constant 0 : i32
    return %c0_i32, %arg0 : i32, i32
  }
  func.func @transform_2(%arg0: i32) -> (i32, i32) {
    %c0_i32 = arith.constant 0 : i32
    %c0_i32_0 = arith.constant 0 : i32
    return %c0_i32, %arg0 : i32, i32
  }
  func.func @transform_3(%arg0: i32) -> (i32, i32) {
    %c0_i32 = arith.constant 0 : i32
    %c0_i32_0 = arith.constant 0 : i32
    return %arg0, %c0_i32 : i32, i32
  }
  func.func @transform_4(%arg0: i32) -> (i32, i32) {
    %c0_i32 = arith.constant 0 : i32
    %c0_i32_0 = arith.constant 0 : i32
    %c0_i32_1 = arith.constant 0 : i32
    return %c0_i32, %c0_i32_0 : i32, i32
  }
  func.func @transform_5(%arg0: i32) -> (i32, i32) {
    %c0_i32 = arith.constant 0 : i32
    %c0_i32_0 = arith.constant 0 : i32
    %c0_i32_1 = arith.constant 0 : i32
    return %c0_i32, %c0_i32_0 : i32, i32
  }
}

module attributes {stable_mosaic.version = 11 : i64} {
  func.func @_heads_kernel(%arg0: i32, %arg1: i32, %arg2: memref<16x64xf32, #tpu.memory_space<vmem>>, %arg3: memref<1x64x8xbf16, #tpu.memory_space<vmem>>, %arg4: memref<1x1x8xf32, #tpu.memory_space<vmem>>, %arg5: memref<1x8x512xbf16, #tpu.memory_space<vmem>>, %arg6: memref<1x16x8xf32, #tpu.memory_space<vmem>>, %arg7: memref<1x16x512xf32, #tpu.memory_space<vmem>>, %arg8: memref<16x8xf32, #tpu.memory_space<vmem>>) attributes {dimension_semantics = [#tpu.dimension_semantics<parallel>, #tpu.dimension_semantics<arbitrary>], iteration_bounds = array<i64: 2, 2>, scalar_prefetch = 0 : i64, scratch_operands = 1 : i64, tpu.core_type = #tpu.core_type<tc>, window_params = [{pipeline_mode = #tpu.pipeline_mode<synchronous>, transform_indices = @transform_0, window_bounds = array<i64: 16, 64>}, {transform_indices = @transform_1, window_bounds = array<i64: 1, 64, 8>}, {transform_indices = @transform_2, window_bounds = array<i64: 1, 1, 8>}, {transform_indices = @transform_3, window_bounds = array<i64: 1, 8, 512>}, {transform_indices = @transform_4, window_bounds = array<i64: 1, 16, 8>}, {transform_indices = @transform_5, window_bounds = array<i64: 1, 16, 512>}]} {
    %c0_i32 = arith.constant 0 : i32
    %0 = arith.cmpi eq, %arg1, %c0_i32 : i32
    %1 = arith.extui %0 : i1 to i32
    %c0_i32_0 = arith.constant 0 : i32
    %2 = arith.cmpi ne, %1, %c0_i32_0 : i32
    scf.if %2 {
      %c0_8 = arith.constant 0 : index
      %c0_9 = arith.constant 0 : index
      %11 = vector.load %arg2[%c0_8, %c0_9] : memref<16x64xf32, #tpu.memory_space<vmem>>, vector<16x64xf32>
      %12 = arith.truncf %11 : vector<16x64xf32> to vector<16x64xbf16>
      %c0_10 = arith.constant 0 : index
      %c0_11 = arith.constant 0 : index
      %c0_12 = arith.constant 0 : index
      %13 = vector.load %arg3[%c0_10, %c0_11, %c0_12] : memref<1x64x8xbf16, #tpu.memory_space<vmem>>, vector<1x64x8xbf16>
      %14 = vector.shape_cast %13 : vector<1x64x8xbf16> to vector<64x8xbf16>
      %cst_13 = arith.constant dense<0.000000e+00> : vector<16x8xf32>
      %15 = tpu.matmul %12, %14, %cst_13 {dimension_numbers = #tpu.dot_dimension_numbers<[1], [0], [0], [1], [0, 0, 1, 1], [], []>} : vector<16x64xbf16>, vector<64x8xbf16>, vector<16x8xf32> -> vector<16x8xf32>
      %c0_14 = arith.constant 0 : index
      %c0_15 = arith.constant 0 : index
      %c0_16 = arith.constant 0 : index
      %16 = vector.load %arg4[%c0_14, %c0_15, %c0_16] : memref<1x1x8xf32, #tpu.memory_space<vmem>>, vector<1x1x8xf32>
      %17 = vector.shape_cast %16 : vector<1x1x8xf32> to vector<1x8xf32>
      %18 = vector.broadcast %17 : vector<1x8xf32> to vector<16x8xf32>
      %19 = arith.addf %15, %18 : vector<16x8xf32>
      %cst_17 = arith.constant dense<0xFF800000> : vector<16xf32>
      %20 = vector.multi_reduction <maximumf>, %19, %cst_17 [1] : vector<16x8xf32> to vector<16xf32>
      %21 = vector.shape_cast %20 : vector<16xf32> to vector<16x1xf32>
      %22 = vector.broadcast %21 : vector<16x1xf32> to vector<16x8xf32>
      %23 = arith.subf %19, %22 : vector<16x8xf32>
      %24 = math.exp %23 : vector<16x8xf32>
      %cst_18 = arith.constant dense<0.000000e+00> : vector<16xf32>
      %25 = vector.multi_reduction <add>, %24, %cst_18 [1] : vector<16x8xf32> to vector<16xf32>
      %26 = vector.shape_cast %25 : vector<16xf32> to vector<16x1xf32>
      %27 = tpu.reciprocal %26 {approx = true} : vector<16x1xf32> -> vector<16x1xf32>
      %28 = vector.broadcast %27 : vector<16x1xf32> to vector<16x8xf32>
      %29 = arith.mulf %24, %28 : vector<16x8xf32>
      %c0_19 = arith.constant 0 : index
      %c0_20 = arith.constant 0 : index
      %30 = vector.load %arg8[%c0_19, %c0_20] : memref<16x8xf32, #tpu.memory_space<vmem>>, vector<16x8xf32>
      tpu.vector_store %arg8[%c0_19, %c0_20], %29 {strides = array<i32>} : memref<16x8xf32, #tpu.memory_space<vmem>>, vector<16x8xf32>,
      %c0_21 = arith.constant 0 : index
      %c0_22 = arith.constant 0 : index
      %c0_23 = arith.constant 0 : index
      %31 = vector.load %arg6[%c0_21, %c0_22, %c0_23] : memref<1x16x8xf32, #tpu.memory_space<vmem>>, vector<1x16x8xf32>
      %32 = vector.shape_cast %31 : vector<1x16x8xf32> to vector<16x8xf32>
      %33 = vector.shape_cast %29 : vector<16x8xf32> to vector<1x16x8xf32>
      tpu.vector_store %arg6[%c0_21, %c0_22, %c0_23], %33 {strides = array<i32>} : memref<1x16x8xf32, #tpu.memory_space<vmem>>, vector<1x16x8xf32>,
    } else {
    }
    %c0 = arith.constant 0 : index
    %c0_1 = arith.constant 0 : index
    %3 = vector.load %arg8[%c0, %c0_1] : memref<16x8xf32, #tpu.memory_space<vmem>>, vector<16x8xf32>
    %4 = arith.truncf %3 : vector<16x8xf32> to vector<16x8xbf16>
    %c0_2 = arith.constant 0 : index
    %c0_3 = arith.constant 0 : index
    %c0_4 = arith.constant 0 : index
    %5 = vector.load %arg5[%c0_2, %c0_3, %c0_4] : memref<1x8x512xbf16, #tpu.memory_space<vmem>>, vector<1x8x512xbf16>
    %6 = vector.shape_cast %5 : vector<1x8x512xbf16> to vector<8x512xbf16>
    %cst = arith.constant dense<0.000000e+00> : vector<16x512xf32>
    %7 = tpu.matmul %4, %6, %cst {dimension_numbers = #tpu.dot_dimension_numbers<[1], [0], [0], [1], [0, 0, 1, 1], [], []>} : vector<16x8xbf16>, vector<8x512xbf16>, vector<16x512xf32> -> vector<16x512xf32>
    %c0_5 = arith.constant 0 : index
    %c0_6 = arith.constant 0 : index
    %c0_7 = arith.constant 0 : index
    %8 = vector.load %arg7[%c0_5, %c0_6, %c0_7] : memref<1x16x512xf32, #tpu.memory_space<vmem>>, vector<1x16x512xf32>
    %9 = vector.shape_cast %8 : vector<1x16x512xf32> to vector<16x512xf32>
    %10 = vector.shape_cast %7 : vector<16x512xf32> to vector<1x16x512xf32>
    tpu.vector_store %arg7[%c0_5, %c0_6, %c0_7], %10 {strides = array<i32>} : memref<1x16x512xf32, #tpu.memory_space<vmem>>, vector<1x16x512xf32>,
    return
  }
  func.func @transform_0(%arg0: i32, %arg1: i32) -> (i32, i32) {
    %c0_i32 = arith.constant 0 : i32
    %c0_i32_0 = arith.constant 0 : i32
    %c0_i32_1 = arith.constant 0 : i32
    return %c0_i32, %c0_i32_0 : i32, i32
  }
  func.func @transform_1(%arg0: i32, %arg1: i32) -> (i32, i32, i32) {
    %c0_i32 = arith.constant 0 : i32
    %c0_i32_0 = arith.constant 0 : i32
    %c0_i32_1 = arith.constant 0 : i32
    return %arg0, %c0_i32, %c0_i32_0 : i32, i32, i32
  }
  func.func @transform_2(%arg0: i32, %arg1: i32) -> (i32, i32, i32) {
    %c0_i32 = arith.constant 0 : i32
    %c0_i32_0 = arith.constant 0 : i32
    %c0_i32_1 = arith.constant 0 : i32
    return %arg0, %c0_i32, %c0_i32_0 : i32, i32, i32
  }
  func.func @transform_3(%arg0: i32, %arg1: i32) -> (i32, i32, i32) {
    %c0_i32 = arith.constant 0 : i32
    %c0_i32_0 = arith.constant 0 : i32
    return %arg0, %c0_i32, %arg1 : i32, i32, i32
  }
  func.func @transform_4(%arg0: i32, %arg1: i32) -> (i32, i32, i32) {
    %c0_i32 = arith.constant 0 : i32
    %c0_i32_0 = arith.constant 0 : i32
    %c0_i32_1 = arith.constant 0 : i32
    return %arg0, %c0_i32, %c0_i32_0 : i32, i32, i32
  }
  func.func @transform_5(%arg0: i32, %arg1: i32) -> (i32, i32, i32) {
    %c0_i32 = arith.constant 0 : i32
    %c0_i32_0 = arith.constant 0 : i32
    return %arg0, %c0_i32, %arg1 : i32, i32, i32
  }
}

</mosaic_0001>

<llo_original>
// kernel: neural_admixture_forward.3
$region0: #{neural_admixture_forward.3}
  #allocation0 [shape = 'u32[]', space=smem, size = 0x4, offset = 0x4, fixed_abs, tag = 'smem constant byte address 0x4 - core index']
  #allocation1 [shape = 'u32[144,128]{1,0:T(1,128)}', space=vmem, size = 0x12000, scoped, tag = 'internal scratch']
  #allocation2 [shape = 'f32[16,8]{1,0:T(8,128)}', space=vmem, size = 0x2000, scoped, tag = 'scratch operand']
  %s0 = inlined_call_operand.vmem [shape: f32[16,64], index: 0, kind: input, shape index: {}]
  %s1 = inlined_call_operand.vmem [shape: bf16[2,64,8], index: 1, kind: input, shape index: {}]
  %s2 = inlined_call_operand.vmem [shape: f32[2,1,8], index: 2, kind: input, shape index: {}]
  %s3 = inlined_call_operand.vmem [shape: bf16[2,8,1024], index: 3, kind: input, shape index: {}]
  %s4 = inlined_call_operand.vmem [shape: f32[2,16,8], index: 4, kind: output, shape index: {0}]
  %s5 = inlined_call_operand.vmem [shape: f32[2,16,1024], index: 5, kind: output, shape index: {1}]
  %6 = xla_tuple %s4, %s5
  %s7 = sld [smem:[#allocation0]]
  $region80: #{neural_admixture_forward.3} parent=0
    _
  %s9 = ssub.s32 1, %s7
  %s10 = scalar_select 0, %s9, %s7
  $region1: #{neural_admixture_forward.3} parent=0
    #allocation3 [shape = 'u8[65536]{0}', space=vmem, size = 0x10000, scoped, tag = 'output window, operand 1']
    loop: start=0, step=1, limit=6
    $region2: #{neural_admixture_forward.3} parent=1 // loop_pre_header
      _
    $region3: #{neural_admixture_forward.3} parent=1 // loop_header
      %s12 = sphi 0, %s16
      %p13 = scmp.ge.s32.totalorder %s12, 6
      %s19 = sphi 0, %s31
      %s20 = sphi 0, %s27
      %s21 = sphi 0, %s19
      %s22 = sphi 0, %s20
      %s23 = sphi 0, %s21
      %s24 = sphi 0, %s22
      %s32 = sphi 0, %s32
      %s34 = sphi 0, %s32
      %s35 = sphi 0, %s34
      %s49 = sphi 0, %s35
      %s55 = sphi 0, %s57
      %s58 = sphi 0, %s55
      %s59 = sphi 0, %s58
      %s75 = sphi 0, %s59
      %s81 = sphi 0, %s83
      %s84 = sphi 0, %s81
      %s85 = sphi 0, %s84
      %s101 = sphi 0, %s85
      %s109 = sphi 0, %s111
      %s112 = sphi 0, %s109
      %s113 = sphi 0, %s112
      %s129 = sphi 0, %s113
      %s135 = sphi 0, %s137
      %s138 = sphi 0, %s135
      %s139 = sphi 0, %s138
      %s155 = sphi 0, %s139
      %s163 = sphi 0, %s165
      %s166 = sphi 0, %s163
      %s167 = sphi 0, %s166
      %s183 = sphi 0, %s167
    $region4: #{neural_admixture_forward.3} parent=1 // loop_header_branch
      %15 = sbr.rel (%p13) target = $region8
    $region5: #{neural_admixture_forward.3} parent=1 // loop_body
      %s17 = ssub.s32 %s12, 1
      %s18 = ssub.s32 %s12, 2
      %s25 = sadd.s32 1, %s20
      %p26 = scmp.ge.s32.totalorder %s25, 2
      %s27 = scalar_select %p26, 0, %s25
      %s28 = sadd.s32 1, %s19
      %s29 = scalar_select %p26, %s28, %s19
      %p30 = scmp.ge.s32.totalorder %s29, 2
      %s31 = scalar_select %p30, 0, %s29
      %s33 = sadd.s32 %s32, 1
      %p36 = scmp.eq.s32.totalorder %s12, 3
      %p37 = scmp.ne.s32.totalorder %s32, %s34
      %p38 = scmp.eq.s32.totalorder %s12, 0
      %p39 = por %p37, %p38
      %p40 = scmp.ne.s32.totalorder %s32, %s34
      %p41 = scmp.eq.s32.totalorder %s17, 3
      %p42 = por %p40, %p41
      %p43 = scmp.ne.s32.totalorder %s34, %s35
      %p44 = scmp.eq.s32.totalorder %s17, 0
      %p45 = por %p43, %p44
      %p46 = scmp.ne.s32.totalorder %s34, %s35
      %p47 = scmp.eq.s32.totalorder %s18, 3
      %p48 = por %p46, %p47
      %p50 = scmp.ne.s32.totalorder %s35, %s49
      %p51 = scmp.eq.s32.totalorder %s18, 0
      %p52 = por %p50, %p51
      %s53 = ssub.s32 %s19, %s31
      %p54 = scmp.eq.s32.totalorder %s53, 0
      %s56 = sadd.s32 %s55, 1
      %s57 = scalar_select %p54, %s55, %s56
      %p60 = pneg %p54
      %p61 = scmp.eq.s32.totalorder %s12, 3
      %p62 = por %p60, %p61
      %p63 = scmp.ne.s32.totalorder %s55, %s58
      %p64 = scmp.eq.s32.totalorder %s12, 0
      %p65 = por %p63, %p64
      %p66 = scmp.ne.s32.totalorder %s55, %s58
      %p67 = scmp.eq.s32.totalorder %s17, 3
      %p68 = por %p66, %p67
      %p69 = scmp.ne.s32.totalorder %s58, %s59
      %p70 = scmp.eq.s32.totalorder %s17, 0
      %p71 = por %p69, %p70
      %p72 = scmp.ne.s32.totalorder %s58, %s59
      %p73 = scmp.eq.s32.totalorder %s18, 3
      %p74 = por %p72, %p73
      %p76 = scmp.ne.s32.totalorder %s59, %s75
      %p77 = scmp.eq.s32.totalorder %s18, 0
      %p78 = por %p76, %p77
      %s79 = ssub.s32 %s19, %s31
      %p80 = scmp.eq.s32.totalorder %s79, 0
      %s82 = sadd.s32 %s81, 1
      %s83 = scalar_select %p80, %s81, %s82
      %p86 = pneg %p80
      %p87 = scmp.eq.s32.totalorder %s12, 3
      %p88 = por %p86, %p87
      %p89 = scmp.ne.s32.totalorder %s81, %s84
      %p90 = scmp.eq.s32.totalorder %s12, 0
      %p91 = por %p89, %p90
      %p92 = scmp.ne.s32.totalorder %s81, %s84
      %p93 = scmp.eq.s32.totalorder %s17, 3
      %p94 = por %p92, %p93
      %p95 = scmp.ne.s32.totalorder %s84, %s85
      %p96 = scmp.eq.s32.totalorder %s17, 0
      %p97 = por %p95, %p96
      %p98 = scmp.ne.s32.totalorder %s84, %s85
      %p99 = scmp.eq.s32.totalorder %s18, 3
      %p100 = por %p98, %p99
      %p102 = scmp.ne.s32.totalorder %s85, %s101
      %p103 = scmp.eq.s32.totalorder %s18, 0
      %p104 = por %p102, %p103
      %s105 = ssub.s32 %s19, %s31
      %s106 = ssub.s32 %s20, %s27
      %s107 = sor.u32 %s105, %s106
      %p108 = scmp.eq.s32.totalorder %s107, 0
      %s110 = sadd.s32 %s109, 1
      %s111 = scalar_select %p108, %s109, %s110
      %p114 = pneg %p108
      %p115 = scmp.eq.s32.totalorder %s12, 3
      %p116 = por %p114, %p115
      %p117 = scmp.ne.s32.totalorder %s109, %s112
      %p118 = scmp.eq.s32.totalorder %s12, 0
      %p119 = por %p117, %p118
      %p120 = scmp.ne.s32.totalorder %s109, %s112
      %p121 = scmp.eq.s32.totalorder %s17, 3
      %p122 = por %p120, %p121
      %p123 = scmp.ne.s32.totalorder %s112, %s113
      %p124 = scmp.eq.s32.totalorder %s17, 0
      %p125 = por %p123, %p124
      %p126 = scmp.ne.s32.totalorder %s112, %s113
      %p127 = scmp.eq.s32.totalorder %s18, 3
      %p128 = por %p126, %p127
      %p130 = scmp.ne.s32.totalorder %s113, %s129
      %p131 = scmp.eq.s32.totalorder %s18, 0
      %p132 = por %p130, %p131
      %s133 = ssub.s32 %s19, %s31
      %p134 = scmp.eq.s32.totalorder %s133, 0
      %s136 = sadd.s32 %s135, 1
      %s137 = scalar_select %p134, %s135, %s136
      %p140 = pneg %p134
      %p141 = scmp.eq.s32.totalorder %s12, 3
      %p142 = por %p140, %p141
      %p143 = scmp.ne.s32.totalorder %s135, %s138
      %p144 = scmp.eq.s32.totalorder %s12, 0
      %p145 = por %p143, %p144
      %p146 = scmp.ne.s32.totalorder %s135, %s138
      %p147 = scmp.eq.s32.totalorder %s17, 3
      %p148 = por %p146, %p147
      %p149 = scmp.ne.s32.totalorder %s138, %s139
      %p150 = scmp.eq.s32.totalorder %s17, 0
      %p151 = por %p149, %p150
      %p152 = scmp.ne.s32.totalorder %s138, %s139
      %p153 = scmp.eq.s32.totalorder %s18, 3
      %p154 = por %p152, %p153
      %p156 = scmp.ne.s32.totalorder %s139, %s155
      %p157 = scmp.eq.s32.totalorder %s18, 0
      %p158 = por %p156, %p157
      %s159 = ssub.s32 %s19, %s31
      %s160 = ssub.s32 %s20, %s27
      %s161 = sor.u32 %s159, %s160
      %p162 = scmp.eq.s32.totalorder %s161, 0
      %s164 = sadd.s32 %s163, 1
      %s165 = scalar_select %p162, %s163, %s164
      %p168 = pneg %p162
      %p169 = scmp.eq.s32.totalorder %s12, 3
      %p170 = por %p168, %p169
      %p171 = scmp.ne.s32.totalorder %s163, %s166
      %p172 = scmp.eq.s32.totalorder %s12, 0
      %p173 = por %p171, %p172
      %p174 = scmp.ne.s32.totalorder %s163, %s166
      %p175 = scmp.eq.s32.totalorder %s17, 3
      %p176 = por %p174, %p175
      %p177 = scmp.ne.s32.totalorder %s166, %s167
      %p178 = scmp.eq.s32.totalorder %s17, 0
      %p179 = por %p177, %p178
      %p180 = scmp.ne.s32.totalorder %s166, %s167
      %p181 = scmp.eq.s32.totalorder %s18, 3
      %p182 = por %p180, %p181
      %p184 = scmp.ne.s32.totalorder %s167, %s183
      %p185 = scmp.eq.s32.totalorder %s18, 0
      %p186 = por %p184, %p185
      %p187 = scmp.le.s32.totalorder 1, %s12
      %p188 = scmp.lt.s32.totalorder %s12, 5
      %p189 = pnand %p187, %p188
      %p190 = pneg %p189
      // Predicated region
      $region9: #{neural_admixture_forward.3} parent=5 // pred_check
        _
      $region10: #{neural_admixture_forward.3} parent=5 // pred_check_branch
        %192 = sbr.rel (%p189) target = $region12
      $region11: #{neural_admixture_forward.3} parent=5 // pred_region
        %s193 = ssub.s32 %s12, 1
        // Predicated region
        $region13: #{neural_admixture_forward.3} parent=11 // pred_check
          %p194 = pneg %p45
        $region14: #{neural_admixture_forward.3} parent=11 // pred_check_branch
          %196 = sbr.rel (%p194) target = $region16
        $region15: #{neural_admixture_forward.3} parent=11 // pred_region
          _
        $region16: #{neural_admixture_forward.3} parent=11 // pred_fallthru
          _
      $region12: #{neural_admixture_forward.3} parent=5 // pred_fallthru
        _
      %p197 = scmp.lt.s32.totalorder %s12, 4
      // Predicated region
      $region17: #{neural_admixture_forward.3} parent=5 // pred_check
        %p198 = pneg %p197
      $region18: #{neural_admixture_forward.3} parent=5 // pred_check_branch
        %200 = sbr.rel (%p198) target = $region20
      $region19: #{neural_admixture_forward.3} parent=5 // pred_region
        // Predicated region
        $region21: #{neural_admixture_forward.3} parent=19 // pred_check
          %p201 = pneg %p65
        $region22: #{neural_admixture_forward.3} parent=19 // pred_check_branch
          %203 = sbr.rel (%p201) target = $region24
        $region23: #{neural_admixture_forward.3} parent=19 // pred_region
          %p204 = scmp.lt.s32.totalorder %s19, 1
          %s205 = scalar_select %p204, %s19, 1
          %s206 = smul.addr %s205, 8
          %s207 = smul.addr %s206, 4
          %s208 = scalar_lea.vmem %s1, %s207
        $region24: #{neural_admixture_forward.3} parent=19 // pred_fallthru
          _
        // Predicated region
        $region25: #{neural_admixture_forward.3} parent=19 // pred_check
          %p209 = pneg %p91
        $region26: #{neural_admixture_forward.3} parent=19 // pred_check_branch
          %211 = sbr.rel (%p209) target = $region28
        $region27: #{neural_admixture_forward.3} parent=19 // pred_region
          %p212 = scmp.lt.s32.totalorder %s19, 1
          %s213 = scalar_select %p212, %s19, 1
          %s214 = scalar_lea.vmem %s2, %s213
        $region28: #{neural_admixture_forward.3} parent=19 // pred_fallthru
          _
        // Predicated region
        $region29: #{neural_admixture_forward.3} parent=19 // pred_check
          %p215 = pneg %p119
        $region30: #{neural_admixture_forward.3} parent=19 // pred_check_branch
          %217 = sbr.rel (%p215) target = $region32
        $region31: #{neural_admixture_forward.3} parent=19 // pred_region
          %s218 = smul.u32 4, %s20
          %p219 = scmp.lt.s32.totalorder %s19, 1
          %s220 = scalar_select %p219, %s19, 1
          %p221 = scmp.lt.s32.totalorder %s218, 7
          %s222 = scalar_select %p221, %s218, 7
          %s223 = smul.addr %s220, 8
          %s224 = sadd.s32 %s222, %s223
          %s225 = smul.addr %s224, 4
          %s226 = scalar_lea.vmem %s3, %s225
          %s227 = smul.u32 4, %s20
        $region32: #{neural_admixture_forward.3} parent=19 // pred_fallthru
          _
      $region20: #{neural_admixture_forward.3} parent=5 // pred_fallthru
        _
      %p228 = scmp.le.s32.totalorder 1, %s12
      %p229 = scmp.lt.s32.totalorder %s12, 5
      %p230 = pnand %p228, %p229
      %p231 = pneg %p230
      // Predicated region
      $region33: #{neural_admixture_forward.3} parent=5 // pred_check
        _
      $region34: #{neural_admixture_forward.3} parent=5 // pred_check_branch
        %233 = sbr.rel (%p230) target = $region36
      $region35: #{neural_admixture_forward.3} parent=5 // pred_region
        %s234 = ssub.s32 %s12, 1
        %p235 = pneg %p45
        %p236 = pneg %p42
        %p237 = scmp.lt.s32.totalorder %s21, 1
        %s238 = scalar_select %p237, %s21, 1
        %s239 = smul.addr %s238, 8
        %s240 = smul.addr %s239, 4
        %s241 = scalar_lea.vmem %s1, %s240
        %p242 = pneg %p71
        %p243 = pneg %p68
        %p244 = scmp.lt.s32.totalorder %s21, 1
        %s245 = scalar_select %p244, %s21, 1
        %s246 = scalar_lea.vmem %s2, %s245
        %p247 = pneg %p97
        %p248 = pneg %p94
        %s249 = smul.u32 4, %s22
        %p250 = scmp.lt.s32.totalorder %s21, 1
        %s251 = scalar_select %p250, %s21, 1
        %p252 = scmp.lt.s32.totalorder %s249, 7
        %s253 = scalar_select %p252, %s249, 7
        %s254 = smul.addr %s251, 8
        %s255 = sadd.s32 %s253, %s254
        %s256 = smul.addr %s255, 4
        %s257 = scalar_lea.vmem %s3, %s256
        %p258 = pneg %p125
        %p259 = pneg %p122
        %p260 = pneg %p151
        %p261 = pneg %p148
        %p262 = scmp.lt.s32.totalorder %s21, 1
        %s263 = scalar_select %p262, %s21, 1
        %s264 = smul.addr %s263, 2
        %s265 = smul.addr %s264, 8
        %s266 = scalar_lea.vmem %s4, %s265
        %p267 = pneg %p179
        %p268 = pneg %p176
        %s269 = sand.u32 %s166, 1
        %s270 = sand.u32 %s166, 1
        %s271 = smul.addr %s270, 64
        %s272 = scalar_lea.vmem [#allocation3], %s271
        %p273 = scmp.lt.s32.totalorder %s21, 1
        %s274 = scalar_select %p273, %s21, 1
        %s275 = smul.addr %s274, 8
        %s276 = smul.addr %s275, 4
        %s277 = scalar_lea.vmem %s1, %s276
        %p278 = scmp.lt.s32.totalorder %s21, 1
        %s279 = scalar_select %p278, %s21, 1
        %s280 = scalar_lea.vmem %s2, %s279
        %s281 = smul.u32 4, %s22
        %p282 = scmp.lt.s32.totalorder %s21, 1
        %s283 = scalar_select %p282, %s21, 1
        %p284 = scmp.lt.s32.totalorder %s281, 7
        %s285 = scalar_select %p284, %s281, 7
        %s286 = smul.addr %s283, 8
        %s287 = sadd.s32 %s285, %s286
        %s288 = smul.addr %s287, 4
        %s289 = scalar_lea.vmem %s3, %s288
        %s290 = smul.u32 4, %s22
        %p291 = scmp.lt.s32.totalorder %s21, 1
        %s292 = scalar_select %p291, %s21, 1
        %s293 = smul.addr %s292, 2
        %s294 = smul.addr %s293, 8
        %s295 = scalar_lea.vmem %s4, %s294
        %s296 = smul.u32 4, %s22
        %p298 = scmp.eq.s32.totalorder %s22, 0
        // Predicated region
        $region37: #{neural_admixture_forward.3} parent=35 // pred_check
          %p299 = pneg %p298
        $region38: #{neural_admixture_forward.3} parent=35 // pred_check_branch
          %301 = sbr.rel (%p299) target = $region40
        $region39: #{neural_admixture_forward.3} parent=35 // pred_region
          %v302 = vld [vmem:[%s0] sm:$0xff]
          %v303 = vld [vmem:[%s0 + $0x8] sm:$0xff]
          %v304 = vpack.c.bf16 %v303, %v302
          %v305 = vld [vmem:[%s277] sm:$0xf]
          %v306 = vld [vmem:[%s277 + $0x4] sm:$0xf]
          %v307 = vld [vmem:[%s277 + $0x8] sm:$0xf]
          %v308 = vld [vmem:[%s277 + $0xc] sm:$0xf]
          %v309 = vld [vmem:[%s277 + $0x10] sm:$0xf]
          %v310 = vld [vmem:[%s277 + $0x14] sm:$0xf]
          %v311 = vld [vmem:[%s277 + $0x18] sm:$0xf]
          %v312 = vld [vmem:[%s277 + $0x1c] sm:$0xf]
          %v313 = vld [vmem:[%s280] sm:$0x1]
          %v315 = vlaneseq
          %v316 = vshrl.u32 %v315, 7
          %v317 = vsub.s32 0, %v316
          %v318 = vrot.slane %v313, %v317
          %v328 = vunpack.c.l.b16 %v305
          %v329 = vunpack.c.l.b16 %v306
          %v330 = vunpack.c.l.b16 %v307
          %v331 = vunpack.c.l.b16 %v308
          %v332 = vunpack.c.l.b16 %v309
          %v333 = vunpack.c.l.b16 %v310
          %v334 = vunpack.c.l.b16 %v311
          %v335 = vunpack.c.l.b16 %v312
          %v336 = vpack.c.b16 %v329, %v328
          %v337 = vpack.c.b16 %v331, %v330
          %v338 = vpack.c.b16 %v333, %v332
          %v339 = vpack.c.b16 %v335, %v334
          %vm344 = vcmask 523264
          %v346 = vsel %vm344, %v304, 0
          %348 = vmatprep.subr.bf16.mxu0 0
          %349 = vmatpush1.bf16.msra.mxu0 %v336
          %350 = vmatprep.subr.bf16.mxu0 0
          %351 = vmatpush1.bf16.msra.mxu0 %v337
          %352 = vmatprep.subr.bf16.mxu0 0
          %353 = vmatpush1.bf16.msra.mxu0 %v338
          %354 = vmatprep.subr.bf16.mxu0 0
          %355 = vmatpush1.bf16.msra.mxu0 %v339
          %356 = vmatprep.subr.bf16.mxu0 0
          %357 = vmatpush1.bf16.msra.mxu0 0
          %358 = vmatprep.subr.bf16.mxu0 0
          %359 = vmatpush1.bf16.msra.mxu0 0
          %360 = vmatprep.subr.bf16.mxu0 0
          %361 = vmatpush1.bf16.msra.mxu0 0
          %362 = vmatprep.subr.bf16.mxu0 0
          %363 = vmatpush1.bf16.msra.mxu0 0
          %364 = vmatprep.subr.bf16.mxu0 0
          %365 = vmatpush1.bf16.msra.mxu0 0
          %366 = vmatprep.subr.bf16.mxu0 0
          %367 = vmatpush1.bf16.msra.mxu0 0
          %368 = vmatprep.subr.bf16.mxu0 0
          %369 = vmatpush1.bf16.msra.mxu0 0
          %370 = vmatprep.subr.bf16.mxu0 0
          %371 = vmatpush1.bf16.msra.mxu0 0
          %372 = vmatprep.subr.bf16.mxu0 0
          %373 = vmatpush1.bf16.msra.mxu0 0
          %374 = vmatprep.subr.bf16.mxu0 0
          %375 = vmatpush1.bf16.msra.mxu0 0
          %376 = vmatprep.subr.bf16.mxu0 0
          %377 = vmatpush1.bf16.msra.mxu0 0
          %378 = vmatprep.subr.bf16.mxu0 0
          %379 = vmatpush1.bf16.msra.mxu0 0
          %380 = vmatprep.mubr.bf16.mxu0 0
          %381 = vmatmul.mubr.bf16.gmra.mrb[0].mxu0 %v346
          %v382 = vpop.f32.mrb[0].mxu0
          %v383 = vadd.f32 %v318, %v382
          %v384 = vpop.f32.mrb[0].mxu0
          %v385 = vpop.f32.mrb[0].mxu0
          %v386 = vadd.f32 %v318, %v385
          %v387 = vpop.f32.mrb[0].mxu0
          %388 = vdwg.mxu0
          %vm389 = vcmask 64512
          %v390 = vsel %vm389, %v383, -inf
          %391 = vmax.xlane.f32.xlu0 %v390
          %v392 = vpop.xlane.xlu0 %391
          %v393 = vsel %vm389, %v386, -inf
          %394 = vmax.xlane.f32.xlu0 %v393
          %v395 = vpop.xlane.xlu0 %394
          %v396 = vsub.f32 %v383, %v392
          %v397 = vsub.f32 %v386, %v395
          %v398 = vmul.f32 %v396, 1.442695
          %v399 = vpow.pop %v398
          %v400 = vmul.f32 %v397, 1.442695
          %v401 = vpow.pop %v400
          %v402 = vsel %vm389, %v399, 0.0
          %403 = vadd.xlane.f32.xlu0 %v402
          %v404 = vpop.xlane.xlu0 %403
          %v405 = vsel %vm389, %v401, 0.0
          %406 = vadd.xlane.f32.xlu0 %v405
          %v407 = vpop.xlane.xlu0 %406
          %v408 = vrcp.pop %v404
          %v409 = vrcp.pop %v407
          %v410 = vmul.f32 %v399, %v408
          %v411 = vmul.f32 %v401, %v409
          %412 = vst.msk [vmem:[#allocation2] sm:$0xff] %vm389, %v410
          %413 = vst.msk [vmem:[#allocation2 + $0x8] sm:$0xff] %vm389, %v411
          %414 = vst.msk [vmem:[%s295] sm:$0xff] %vm389, %v410
          %415 = vst.msk [vmem:[%s295 + $0x8] sm:$0xff] %vm389, %v411
        $region40: #{neural_admixture_forward.3} parent=35 // pred_fallthru
          _
        %v416 = vld [vmem:[#allocation2] sm:$0xff]
        %v417 = vld [vmem:[#allocation2 + $0x8] sm:$0xff]
        %v418 = vpack.c.bf16 %v417, %v416
        %v419 = vld [vmem:[%s289] sm:$0xff]
        %v420 = vld [vmem:[%s289 + $0x8] sm:$0xff]
        %v423 = vunpack.c.l.b16 %v419
        %v424 = vunpack.c.h.b16 %v419
        %v425 = vunpack.c.l.b16 %v420
        %v426 = vunpack.c.h.b16 %v420
        %v427 = vpack.c.b16 %v423, %v423
        %v428 = vpack.c.b16 %v424, %v424
        %v429 = vpack.c.b16 %v425, %v425
        %v430 = vpack.c.b16 %v426, %v426
        %vm431 = vcmask 64512
        %v433 = vsel %vm431, %v418, 0
        %vm435 = vcmask 1043456
        %v437 = vsel %vm435, %v427, 0
        %v440 = vsel %vm435, %v428, 0
        %v443 = vsel %vm435, %v429, 0
        %v446 = vsel %vm435, %v430, 0
        %448 = vmatprep.subr.bf16.mxu0 %v440
        %449 = vmatpush1.bf16.msra.mxu0 %v437
        %450 = vmatprep.subr.bf16.mxu0 0
        %451 = vmatpush1.bf16.msra.mxu0 0
        %452 = vmatprep.subr.bf16.mxu0 0
        %453 = vmatpush1.bf16.msra.mxu0 0
        %454 = vmatprep.subr.bf16.mxu0 0
        %455 = vmatpush1.bf16.msra.mxu0 0
        %456 = vmatprep.subr.bf16.mxu0 0
        %457 = vmatpush1.bf16.msra.mxu0 0
        %458 = vmatprep.subr.bf16.mxu0 0
        %459 = vmatpush1.bf16.msra.mxu0 0
        %460 = vmatprep.subr.bf16.mxu0 0
        %461 = vmatpush1.bf16.msra.mxu0 0
        %462 = vmatprep.subr.bf16.mxu0 0
        %463 = vmatpush1.bf16.msra.mxu0 0
        %464 = vmatprep.subr.bf16.mxu0 0
        %465 = vmatpush1.bf16.msra.mxu0 0
        %466 = vmatprep.subr.bf16.mxu0 0
        %467 = vmatpush1.bf16.msra.mxu0 0
        %468 = vmatprep.subr.bf16.mxu0 0
        %469 = vmatpush1.bf16.msra.mxu0 0
        %470 = vmatprep.subr.bf16.mxu0 0
        %471 = vmatpush1.bf16.msra.mxu0 0
        %472 = vmatprep.subr.bf16.mxu0 0
        %473 = vmatpush1.bf16.msra.mxu0 0
        %474 = vmatprep.subr.bf16.mxu0 0
        %475 = vmatpush1.bf16.msra.mxu0 0
        %476 = vmatprep.subr.bf16.mxu0 0
        %477 = vmatpush1.bf16.msra.mxu0 0
        %478 = vmatprep.subr.bf16.mxu0 0
        %479 = vmatpush1.bf16.msra.mxu0 0
        %480 = vmatprep.mubr.bf16.mxu0 0
        %481 = vmatmul.mubr.bf16.gmra.mrb[0].mxu0 %v433
        %v482 = vpop.f32.mrb[0].mxu0
        %v483 = vadd.f32 0.0, %v482
        %v484 = vpop.f32.mrb[0].mxu0
        %v485 = vadd.f32 0.0, %v484
        %v486 = vpop.f32.mrb[0].mxu0
        %v487 = vadd.f32 0.0, %v486
        %v488 = vpop.f32.mrb[0].mxu0
        %v489 = vadd.f32 0.0, %v488
        %490 = vdwg.mxu0
        %491 = vmatprep.subr.bf16.mxu0 %v446
        %492 = vmatpush1.bf16.msra.mxu0 %v443
        %493 = vmatprep.subr.bf16.mxu0 0
        %494 = vmatpush1.bf16.msra.mxu0 0
        %495 = vmatprep.subr.bf16.mxu0 0
        %496 = vmatpush1.bf16.msra.mxu0 0
        %497 = vmatprep.subr.bf16.mxu0 0
        %498 = vmatpush1.bf16.msra.mxu0 0
        %499 = vmatprep.subr.bf16.mxu0 0
        %500 = vmatpush1.bf16.msra.mxu0 0
        %501 = vmatprep.subr.bf16.mxu0 0
        %502 = vmatpush1.bf16.msra.mxu0 0
        %503 = vmatprep.subr.bf16.mxu0 0
        %504 = vmatpush1.bf16.msra.mxu0 0
        %505 = vmatprep.subr.bf16.mxu0 0
        %506 = vmatpush1.bf16.msra.mxu0 0
        %507 = vmatprep.subr.bf16.mxu0 0
        %508 = vmatpush1.bf16.msra.mxu0 0
        %509 = vmatprep.subr.bf16.mxu0 0
        %510 = vmatpush1.bf16.msra.mxu0 0
        %511 = vmatprep.subr.bf16.mxu0 0
        %512 = vmatpush1.bf16.msra.mxu0 0
        %513 = vmatprep.subr.bf16.mxu0 0
        %514 = vmatpush1.bf16.msra.mxu0 0
        %515 = vmatprep.subr.bf16.mxu0 0
        %516 = vmatpush1.bf16.msra.mxu0 0
        %517 = vmatprep.subr.bf16.mxu0 0
        %518 = vmatpush1.bf16.msra.mxu0 0
        %519 = vmatprep.subr.bf16.mxu0 0
        %520 = vmatpush1.bf16.msra.mxu0 0
        %521 = vmatprep.subr.bf16.mxu0 0
        %522 = vmatpush1.bf16.msra.mxu0 0
        %523 = vmatprep.mubr.bf16.mxu0 0
        %524 = vmatmul.mubr.bf16.gmra.mrb[0].mxu0 %v433
        %v525 = vpop.f32.mrb[0].mxu0
        %v526 = vadd.f32 0.0, %v525
        %v527 = vpop.f32.mrb[0].mxu0
        %v528 = vadd.f32 0.0, %v527
        %v529 = vpop.f32.mrb[0].mxu0
        %v530 = vadd.f32 0.0, %v529
        %v531 = vpop.f32.mrb[0].mxu0
        %v532 = vadd.f32 0.0, %v531
        %533 = vdwg.mxu0
        %534 = vst [vmem:[%s272] sm:$0xff] %v483
        %535 = vst [vmem:[%s272 + $0x8] sm:$0xff] %v485
        %536 = vst [vmem:[%s272 + $0x10] sm:$0xff] %v526
        %537 = vst [vmem:[%s272 + $0x18] sm:$0xff] %v528
        %538 = vst [vmem:[%s272 + $0x20] sm:$0xff] %v487
        %539 = vst [vmem:[%s272 + $0x28] sm:$0xff] %v489
        %540 = vst [vmem:[%s272 + $0x30] sm:$0xff] %v530
        %541 = vst [vmem:[%s272 + $0x38] sm:$0xff] %v532
        %p542 = scmp.lt.s32.totalorder %s21, 1
        %s543 = scalar_select %p542, %s21, 1
        %s544 = smul.addr %s543, 2
        %s545 = smul.addr %s544, 8
        %s546 = scalar_lea.vmem %s4, %s545
        %s547 = sand.u32 %s166, 1
        %s548 = sand.u32 %s166, 1
        %s549 = smul.addr %s548, 64
        %s550 = scalar_lea.vmem [#allocation3], %s549
        // Predicated region
        $region41: #{neural_admixture_forward.3} parent=35 // pred_check
          %p551 = pneg %p148
        $region42: #{neural_admixture_forward.3} parent=35 // pred_check_branch
          %553 = sbr.rel (%p551) target = $region44
        $region43: #{neural_admixture_forward.3} parent=35 // pred_region
          _
        $region44: #{neural_admixture_forward.3} parent=35 // pred_fallthru
          _
        // Predicated region
        $region45: #{neural_admixture_forward.3} parent=35 // pred_check
          %p554 = pneg %p176
        $region46: #{neural_admixture_forward.3} parent=35 // pred_check_branch
          %556 = sbr.rel (%p554) target = $region48
        $region47: #{neural_admixture_forward.3} parent=35 // pred_region
          %s557 = smul.u32 4, %s22
          %s558 = smul.addr %s21, 16
          %s559 = sadd.s32 %s557, %s558
          %s560 = smul.addr %s559, 8
          %s561 = scalar_lea.vmem %s5, %s560
          // Predicated region
          $region49: #{neural_admixture_forward.3} parent=47 // pred_check
            _
          $region50: #{neural_admixture_forward.3} parent=47 // pred_check_branch
            %563 = sbr.rel (0) target = $region52
          $region51: #{neural_admixture_forward.3} parent=47 // pred_region
            // Predicated region
            $region53: #{neural_admixture_forward.3} parent=51 // pred_check
              _
            $region54: #{neural_admixture_forward.3} parent=51 // pred_check_branch
              %565 = sbr.rel (0) target = $region56
            $region55: #{neural_admixture_forward.3} parent=51 // pred_region
              loop: start=0, step=1, limit=1
              $region57: #{neural_admixture_forward.3} parent=55 // loop_pre_header
                _
              $region58: #{neural_admixture_forward.3} parent=55 // loop_header
                %s567 = sphi 0, %s571
                %p568 = scmp.ge.s32.totalorder %s567, 1
                %s572 = sphi %s550, %s550
                %s573 = sphi %s561, %s561
              $region59: #{neural_admixture_forward.3} parent=55 // loop_header_branch
                %570 = sbr.rel (%p568) target = $region63
              $region60: #{neural_admixture_forward.3} parent=55 // loop_body
                %v574 = vld [vmem:[%s572] sm:$0xff]
                %575 = vst [vmem:[%s573] sm:$0xff] %v574
                %v576 = vld [vmem:[%s572 + $0x8] sm:$0xff]
                %577 = vst [vmem:[%s573 + $0x8] sm:$0xff] %v576
                %v578 = vld [vmem:[%s572 + $0x10] sm:$0xff]
                %579 = vst [vmem:[%s573 + $0x10] sm:$0xff] %v578
                %v580 = vld [vmem:[%s572 + $0x18] sm:$0xff]
                %581 = vst [vmem:[%s573 + $0x18] sm:$0xff] %v580
                %v582 = vld [vmem:[%s572 + $0x20] sm:$0xff]
                %583 = vst [vmem:[%s573 + $0x40] sm:$0xff] %v582
                %v584 = vld [vmem:[%s572 + $0x28] sm:$0xff]
                %585 = vst [vmem:[%s573 + $0x48] sm:$0xff] %v584
                %v586 = vld [vmem:[%s572 + $0x30] sm:$0xff]
                %587 = vst [vmem:[%s573 + $0x50] sm:$0xff] %v586
                %v588 = vld [vmem:[%s572 + $0x38] sm:$0xff]
                %589 = vst [vmem:[%s573 + $0x58] sm:$0xff] %v588
              $region61: #{neural_admixture_forward.3} parent=55 // loop_footer
                %s571 = sadd.s32 1, %s567
              $region62: #{neural_admixture_forward.3} parent=55 // loop_footer_branch
                %566 = sbr.rel target = $region58
              $region63: #{neural_admixture_forward.3} parent=55 // loop_exit
                _
            $region56: #{neural_admixture_forward.3} parent=51 // pred_fallthru
              _
            // Predicated region
            $region64: #{neural_admixture_forward.3} parent=51 // pred_check
              _
            $region65: #{neural_admixture_forward.3} parent=51 // pred_check_branch
              %591 = sbr.rel target = $region67
            $region66: #{neural_admixture_forward.3} parent=51 // pred_region
              _
            $region67: #{neural_admixture_forward.3} parent=51 // pred_fallthru
              _
          $region52: #{neural_admixture_forward.3} parent=47 // pred_fallthru
            _
          %592 = vnop
        $region48: #{neural_admixture_forward.3} parent=35 // pred_fallthru
          _
      $region36: #{neural_admixture_forward.3} parent=5 // pred_fallthru
        _
      %p593 = scmp.le.s32.totalorder 2, %s12
      // Predicated region
      $region68: #{neural_admixture_forward.3} parent=5 // pred_check
        %p594 = pneg %p593
      $region69: #{neural_admixture_forward.3} parent=5 // pred_check_branch
        %596 = sbr.rel (%p594) target = $region71
      $region70: #{neural_admixture_forward.3} parent=5 // pred_region
        %s597 = ssub.s32 %s12, 2
        // Predicated region
        $region72: #{neural_admixture_forward.3} parent=70 // pred_check
          %p598 = pneg %p154
        $region73: #{neural_admixture_forward.3} parent=70 // pred_check_branch
          %600 = sbr.rel (%p598) target = $region75
        $region74: #{neural_admixture_forward.3} parent=70 // pred_region
          %p601 = scmp.lt.s32.totalorder %s23, 1
          %s602 = scalar_select %p601, %s23, 1
          %s603 = smul.addr %s602, 2
          %s604 = smul.addr %s603, 8
          %s605 = scalar_lea.vmem %s4, %s604
        $region75: #{neural_admixture_forward.3} parent=70 // pred_fallthru
          _
        // Predicated region
        $region76: #{neural_admixture_forward.3} parent=70 // pred_check
          %p606 = pneg %p182
        $region77: #{neural_admixture_forward.3} parent=70 // pred_check_branch
          %608 = sbr.rel (%p606) target = $region79
        $region78: #{neural_admixture_forward.3} parent=70 // pred_region
          %s609 = sand.u32 %s167, 1
          %s610 = sand.u32 %s167, 1
          %s611 = smul.addr %s610, 64
          %s612 = scalar_lea.vmem [#allocation3], %s611
        $region79: #{neural_admixture_forward.3} parent=70 // pred_fallthru
          _
      $region71: #{neural_admixture_forward.3} parent=5 // pred_fallthru
        _
    $region6: #{neural_admixture_forward.3} parent=1 // loop_footer
      %s16 = sadd.s32 1, %s12
    $region7: #{neural_admixture_forward.3} parent=1 // loop_footer_branch
      %11 = sbr.rel target = $region3
    $region8: #{neural_admixture_forward.3} parent=1 // loop_exit
      _

// kernel: neural_admixture_forward.2
$region0: #{neural_admixture_forward.2}
  #allocation0 [shape = 'u32[]', space=smem, size = 0x4, offset = 0x4, fixed_abs, tag = 'smem constant byte address 0x4 - core index']
  #allocation1 [shape = 'u32[144,128]{1,0:T(1,128)}', space=vmem, size = 0x12000, scoped, tag = 'internal scratch']
  #allocation2 [shape = 'f32[16,64]{1,0:T(8,128)}', space=vmem, size = 0x2000, scoped, tag = 'scratch operand']
  %s0 = inlined_call_operand.vmem [shape: f32[16,1024], index: 0, kind: input, shape index: {}]
  %s1 = inlined_call_operand.vmem [shape: f32[1,1024], index: 1, kind: input, shape index: {}]
  %s2 = inlined_call_operand.vmem [shape: f32[1,1024], index: 2, kind: input, shape index: {}]
  %s3 = inlined_call_operand.vmem [shape: bf16[1024,64], index: 3, kind: input, shape index: {}]
  %s4 = inlined_call_operand.vmem [shape: f32[1,64], index: 4, kind: input, shape index: {}]
  %s5 = inlined_call_operand.vmem [shape: f32[16,64], index: 5, kind: output, shape index: {}]
  %s6 = sld [smem:[#allocation0]]
  $region84: #{neural_admixture_forward.2} parent=0
    _
  %s8 = ssub.s32 1, %s6
  %s9 = scalar_select 0, %s8, %s6
  $region1: #{neural_admixture_forward.2} parent=0
    #allocation3 [shape = 'u8[65536]{0}', space=vmem, size = 0x10000, scoped, tag = 'input window, operand 0']
    loop: start=0, step=1, limit=4
    $region2: #{neural_admixture_forward.2} parent=1 // loop_pre_header
      _
    $region3: #{neural_admixture_forward.2} parent=1 // loop_header
      %s11 = sphi 0, %s15
      %p12 = scmp.ge.s32.totalorder %s11, 4
      %s21 = sphi 0, %s23
      %s24 = sphi 0, %s21
      %s25 = sphi 0, %s24
      %s41 = sphi 0, %s25
      %s47 = sphi 0, %s49
      %s50 = sphi 0, %s47
      %s51 = sphi 0, %s50
      %s67 = sphi 0, %s51
      %s73 = sphi 0, %s75
      %s76 = sphi 0, %s73
      %s77 = sphi 0, %s76
      %s93 = sphi 0, %s77
      %s99 = sphi 0, %s101
      %s102 = sphi 0, %s99
      %s103 = sphi 0, %s102
      %s119 = sphi 0, %s103
      %s123 = sphi 0, %s123
      %s125 = sphi 0, %s123
      %s126 = sphi 0, %s125
      %s140 = sphi 0, %s126
      %s144 = sphi 0, %s144
      %s146 = sphi 0, %s144
      %s147 = sphi 0, %s146
      %s161 = sphi 0, %s147
    $region4: #{neural_admixture_forward.2} parent=1 // loop_header_branch
      %14 = sbr.rel (%p12) target = $region8
    $region5: #{neural_admixture_forward.2} parent=1 // loop_body
      %s16 = ssub.s32 %s11, 1
      %s17 = ssub.s32 %s11, 2
      %s18 = sadd.s32 %s11, 1
      %s19 = ssub.s32 %s11, %s18
      %p20 = scmp.eq.s32.totalorder %s19, 0
      %s22 = sadd.s32 %s21, 1
      %s23 = scalar_select %p20, %s21, %s22
      %p26 = pneg %p20
      %p27 = scmp.eq.s32.totalorder %s11, 1
      %p28 = por %p26, %p27
      %p29 = scmp.ne.s32.totalorder %s21, %s24
      %p30 = scmp.eq.s32.totalorder %s11, 0
      %p31 = por %p29, %p30
      %p32 = scmp.ne.s32.totalorder %s21, %s24
      %p33 = scmp.eq.s32.totalorder %s16, 1
      %p34 = por %p32, %p33
      %p35 = scmp.ne.s32.totalorder %s24, %s25
      %p36 = scmp.eq.s32.totalorder %s16, 0
      %p37 = por %p35, %p36
      %p38 = scmp.ne.s32.totalorder %s24, %s25
      %p39 = scmp.eq.s32.totalorder %s17, 1
      %p40 = por %p38, %p39
      %p42 = scmp.ne.s32.totalorder %s25, %s41
      %p43 = scmp.eq.s32.totalorder %s17, 0
      %p44 = por %p42, %p43
      %s45 = ssub.s32 %s11, %s18
      %p46 = scmp.eq.s32.totalorder %s45, 0
      %s48 = sadd.s32 %s47, 1
      %s49 = scalar_select %p46, %s47, %s48
      %p52 = pneg %p46
      %p53 = scmp.eq.s32.totalorder %s11, 1
      %p54 = por %p52, %p53
      %p55 = scmp.ne.s32.totalorder %s47, %s50
      %p56 = scmp.eq.s32.totalorder %s11, 0
      %p57 = por %p55, %p56
      %p58 = scmp.ne.s32.totalorder %s47, %s50
      %p59 = scmp.eq.s32.totalorder %s16, 1
      %p60 = por %p58, %p59
      %p61 = scmp.ne.s32.totalorder %s50, %s51
      %p62 = scmp.eq.s32.totalorder %s16, 0
      %p63 = por %p61, %p62
      %p64 = scmp.ne.s32.totalorder %s50, %s51
      %p65 = scmp.eq.s32.totalorder %s17, 1
      %p66 = por %p64, %p65
      %p68 = scmp.ne.s32.totalorder %s51, %s67
      %p69 = scmp.eq.s32.totalorder %s17, 0
      %p70 = por %p68, %p69
      %s71 = ssub.s32 %s11, %s18
      %p72 = scmp.eq.s32.totalorder %s71, 0
      %s74 = sadd.s32 %s73, 1
      %s75 = scalar_select %p72, %s73, %s74
      %p78 = pneg %p72
      %p79 = scmp.eq.s32.totalorder %s11, 1
      %p80 = por %p78, %p79
      %p81 = scmp.ne.s32.totalorder %s73, %s76
      %p82 = scmp.eq.s32.totalorder %s11, 0
      %p83 = por %p81, %p82
      %p84 = scmp.ne.s32.totalorder %s73, %s76
      %p85 = scmp.eq.s32.totalorder %s16, 1
      %p86 = por %p84, %p85
      %p87 = scmp.ne.s32.totalorder %s76, %s77
      %p88 = scmp.eq.s32.totalorder %s16, 0
      %p89 = por %p87, %p88
      %p90 = scmp.ne.s32.totalorder %s76, %s77
      %p91 = scmp.eq.s32.totalorder %s17, 1
      %p92 = por %p90, %p91
      %p94 = scmp.ne.s32.totalorder %s77, %s93
      %p95 = scmp.eq.s32.totalorder %s17, 0
      %p96 = por %p94, %p95
      %s97 = ssub.s32 %s11, %s18
      %p98 = scmp.eq.s32.totalorder %s97, 0
      %s100 = sadd.s32 %s99, 1
      %s101 = scalar_select %p98, %s99, %s100
      %p104 = pneg %p98
      %p105 = scmp.eq.s32.totalorder %s11, 1
      %p106 = por %p104, %p105
      %p107 = scmp.ne.s32.totalorder %s99, %s102
      %p108 = scmp.eq.s32.totalorder %s11, 0
      %p109 = por %p107, %p108
      %p110 = scmp.ne.s32.totalorder %s99, %s102
      %p111 = scmp.eq.s32.totalorder %s16, 1
      %p112 = por %p110, %p111
      %p113 = scmp.ne.s32.totalorder %s102, %s103
      %p114 = scmp.eq.s32.totalorder %s16, 0
      %p115 = por %p113, %p114
      %p116 = scmp.ne.s32.totalorder %s102, %s103
      %p117 = scmp.eq.s32.totalorder %s17, 1
      %p118 = por %p116, %p117
      %p120 = scmp.ne.s32.totalorder %s103, %s119
      %p121 = scmp.eq.s32.totalorder %s17, 0
      %p122 = por %p120, %p121
      %s124 = sadd.s32 %s123, 1
      %p127 = scmp.eq.s32.totalorder %s11, 1
      %p128 = scmp.ne.s32.totalorder %s123, %s125
      %p129 = scmp.eq.s32.totalorder %s11, 0
      %p130 = por %p128, %p129
      %p131 = scmp.ne.s32.totalorder %s123, %s125
      %p132 = scmp.eq.s32.totalorder %s16, 1
      %p133 = por %p131, %p132
      %p134 = scmp.ne.s32.totalorder %s125, %s126
      %p135 = scmp.eq.s32.totalorder %s16, 0
      %p136 = por %p134, %p135
      %p137 = scmp.ne.s32.totalorder %s125, %s126
      %p138 = scmp.eq.s32.totalorder %s17, 1
      %p139 = por %p137, %p138
      %p141 = scmp.ne.s32.totalorder %s126, %s140
      %p142 = scmp.eq.s32.totalorder %s17, 0
      %p143 = por %p141, %p142
      %s145 = sadd.s32 %s144, 1
      %p148 = scmp.eq.s32.totalorder %s11, 1
      %p149 = scmp.ne.s32.totalorder %s144, %s146
      %p150 = scmp.eq.s32.totalorder %s11, 0
      %p151 = por %p149, %p150
      %p152 = scmp.ne.s32.totalorder %s144, %s146
      %p153 = scmp.eq.s32.totalorder %s16, 1
      %p154 = por %p152, %p153
      %p155 = scmp.ne.s32.totalorder %s146, %s147
      %p156 = scmp.eq.s32.totalorder %s16, 0
      %p157 = por %p155, %p156
      %p158 = scmp.ne.s32.totalorder %s146, %s147
      %p159 = scmp.eq.s32.totalorder %s17, 1
      %p160 = por %p158, %p159
      %p162 = scmp.ne.s32.totalorder %s147, %s161
      %p163 = scmp.eq.s32.totalorder %s17, 0
      %p164 = por %p162, %p163
      %p165 = scmp.le.s32.totalorder 1, %s11
      %p166 = scmp.lt.s32.totalorder %s11, 3
      %p167 = pnand %p165, %p166
      %p168 = pneg %p167
      // Predicated region
      $region9: #{neural_admixture_forward.2} parent=5 // pred_check
        _
      $region10: #{neural_admixture_forward.2} parent=5 // pred_check_branch
        %170 = sbr.rel (%p167) target = $region12
      $region11: #{neural_admixture_forward.2} parent=5 // pred_region
        %s171 = ssub.s32 %s11, 1
        // Predicated region
        $region13: #{neural_admixture_forward.2} parent=11 // pred_check
          %p172 = pneg %p136
        $region14: #{neural_admixture_forward.2} parent=11 // pred_check_branch
          %174 = sbr.rel (%p172) target = $region16
        $region15: #{neural_admixture_forward.2} parent=11 // pred_region
          _
        $region16: #{neural_admixture_forward.2} parent=11 // pred_fallthru
          _
      $region12: #{neural_admixture_forward.2} parent=5 // pred_fallthru
        _
      %p175 = scmp.lt.s32.totalorder %s11, 2
      // Predicated region
      $region17: #{neural_admixture_forward.2} parent=5 // pred_check
        %p176 = pneg %p175
      $region18: #{neural_admixture_forward.2} parent=5 // pred_check_branch
        %178 = sbr.rel (%p176) target = $region20
      $region19: #{neural_admixture_forward.2} parent=5 // pred_region
        // Predicated region
        $region21: #{neural_admixture_forward.2} parent=19 // pred_check
          %p179 = pneg %p31
        $region22: #{neural_admixture_forward.2} parent=19 // pred_check_branch
          %181 = sbr.rel (%p179) target = $region24
        $region23: #{neural_admixture_forward.2} parent=19 // pred_region
          %s182 = sand.u32 %s21, 1
          %s183 = sand.u32 %s21, 1
          %s184 = smul.addr %s183, 64
          %s185 = scalar_lea.vmem [#allocation3], %s184
          %s186 = smul.u32 4, %s11
          %s187 = smul.addr %s186, 8
          %s188 = scalar_lea.vmem %s0, %s187
          // Predicated region
          $region25: #{neural_admixture_forward.2} parent=23 // pred_check
            _
          $region26: #{neural_admixture_forward.2} parent=23 // pred_check_branch
            %190 = sbr.rel (0) target = $region28
          $region27: #{neural_admixture_forward.2} parent=23 // pred_region
            // Predicated region
            $region29: #{neural_admixture_forward.2} parent=27 // pred_check
              _
            $region30: #{neural_admixture_forward.2} parent=27 // pred_check_branch
              %192 = sbr.rel (0) target = $region32
            $region31: #{neural_admixture_forward.2} parent=27 // pred_region
              loop: start=0, step=1, limit=1
              $region33: #{neural_admixture_forward.2} parent=31 // loop_pre_header
                _
              $region34: #{neural_admixture_forward.2} parent=31 // loop_header
                %s194 = sphi 0, %s198
                %p195 = scmp.ge.s32.totalorder %s194, 1
                %s199 = sphi %s188, %s188
                %s200 = sphi %s185, %s185
              $region35: #{neural_admixture_forward.2} parent=31 // loop_header_branch
                %197 = sbr.rel (%p195) target = $region39
              $region36: #{neural_admixture_forward.2} parent=31 // loop_body
                %v201 = vld [vmem:[%s199] sm:$0xff]
                %202 = vst [vmem:[%s200] sm:$0xff] %v201
                %v203 = vld [vmem:[%s199 + $0x8] sm:$0xff]
                %204 = vst [vmem:[%s200 + $0x8] sm:$0xff] %v203
                %v205 = vld [vmem:[%s199 + $0x10] sm:$0xff]
                %206 = vst [vmem:[%s200 + $0x10] sm:$0xff] %v205
                %v207 = vld [vmem:[%s199 + $0x18] sm:$0xff]
                %208 = vst [vmem:[%s200 + $0x18] sm:$0xff] %v207
                %v209 = vld [vmem:[%s199 + $0x40] sm:$0xff]
                %210 = vst [vmem:[%s200 + $0x20] sm:$0xff] %v209
                %v211 = vld [vmem:[%s199 + $0x48] sm:$0xff]
                %212 = vst [vmem:[%s200 + $0x28] sm:$0xff] %v211
                %v213 = vld [vmem:[%s199 + $0x50] sm:$0xff]
                %214 = vst [vmem:[%s200 + $0x30] sm:$0xff] %v213
                %v215 = vld [vmem:[%s199 + $0x58] sm:$0xff]
                %216 = vst [vmem:[%s200 + $0x38] sm:$0xff] %v215
              $region37: #{neural_admixture_forward.2} parent=31 // loop_footer
                %s198 = sadd.s32 1, %s194
              $region38: #{neural_admixture_forward.2} parent=31 // loop_footer_branch
                %193 = sbr.rel target = $region34
              $region39: #{neural_admixture_forward.2} parent=31 // loop_exit
                _
            $region32: #{neural_admixture_forward.2} parent=27 // pred_fallthru
              _
            // Predicated region
            $region40: #{neural_admixture_forward.2} parent=27 // pred_check
              _
            $region41: #{neural_admixture_forward.2} parent=27 // pred_check_branch
              %218 = sbr.rel target = $region43
            $region42: #{neural_admixture_forward.2} parent=27 // pred_region
              _
            $region43: #{neural_admixture_forward.2} parent=27 // pred_fallthru
              _
          $region28: #{neural_admixture_forward.2} parent=23 // pred_fallthru
            _
          %219 = vnop
        $region24: #{neural_admixture_forward.2} parent=19 // pred_fallthru
          _
        // Predicated region
        $region44: #{neural_admixture_forward.2} parent=19 // pred_check
          %p220 = pneg %p57
        $region45: #{neural_admixture_forward.2} parent=19 // pred_check_branch
          %222 = sbr.rel (%p220) target = $region47
        $region46: #{neural_admixture_forward.2} parent=19 // pred_region
          %s223 = smul.u32 4, %s11
          %p224 = scmp.lt.s32.totalorder %s223, 7
          %s225 = scalar_select %p224, %s223, 7
          %s226 = scalar_lea.vmem %s1, %s225
          %s227 = smul.u32 4, %s11
        $region47: #{neural_admixture_forward.2} parent=19 // pred_fallthru
          _
        // Predicated region
        $region48: #{neural_admixture_forward.2} parent=19 // pred_check
          %p228 = pneg %p83
        $region49: #{neural_admixture_forward.2} parent=19 // pred_check_branch
          %230 = sbr.rel (%p228) target = $region51
        $region50: #{neural_admixture_forward.2} parent=19 // pred_region
          %s231 = smul.u32 4, %s11
          %p232 = scmp.lt.s32.totalorder %s231, 7
          %s233 = scalar_select %p232, %s231, 7
          %s234 = scalar_lea.vmem %s2, %s233
          %s235 = smul.u32 4, %s11
        $region51: #{neural_admixture_forward.2} parent=19 // pred_fallthru
          _
        // Predicated region
        $region52: #{neural_admixture_forward.2} parent=19 // pred_check
          %p236 = pneg %p109
        $region53: #{neural_admixture_forward.2} parent=19 // pred_check_branch
          %238 = sbr.rel (%p236) target = $region55
        $region54: #{neural_admixture_forward.2} parent=19 // pred_region
          %s239 = smul.u32 64, %s11
          %p240 = scmp.lt.s32.totalorder %s239, 127
          %s241 = scalar_select %p240, %s239, 127
          %s242 = smul.addr %s241, 4
          %s243 = scalar_lea.vmem %s3, %s242
          %s244 = smul.u32 64, %s11
        $region55: #{neural_admixture_forward.2} parent=19 // pred_fallthru
          _
      $region20: #{neural_admixture_forward.2} parent=5 // pred_fallthru
        _
      %p245 = scmp.le.s32.totalorder 1, %s11
      %p246 = scmp.lt.s32.totalorder %s11, 3
      %p247 = pnand %p245, %p246
      %p248 = pneg %p247
      // Predicated region
      $region56: #{neural_admixture_forward.2} parent=5 // pred_check
        _
      $region57: #{neural_admixture_forward.2} parent=5 // pred_check_branch
        %250 = sbr.rel (%p247) target = $region59
      $region58: #{neural_admixture_forward.2} parent=5 // pred_region
        %s251 = ssub.s32 %s11, 1
        %s252 = sand.u32 %s24, 1
        %s253 = sand.u32 %s24, 1
        %s254 = smul.addr %s253, 64
        %s255 = scalar_lea.vmem [#allocation3], %s254
        // Predicated region
        $region60: #{neural_admixture_forward.2} parent=58 // pred_check
          %p256 = pneg %p37
        $region61: #{neural_admixture_forward.2} parent=58 // pred_check_branch
          %258 = sbr.rel (%p256) target = $region63
        $region62: #{neural_admixture_forward.2} parent=58 // pred_region
          _
        $region63: #{neural_admixture_forward.2} parent=58 // pred_fallthru
          _
        %s259 = sand.u32 %s24, 1
        %s260 = sand.u32 %s24, 1
        %s261 = smul.addr %s260, 64
        %s262 = scalar_lea.vmem [#allocation3], %s261
        %p263 = pneg %p37
        %p264 = pneg %p34
        %s265 = smul.u32 4, %s16
        %p266 = scmp.lt.s32.totalorder %s265, 7
        %s267 = scalar_select %p266, %s265, 7
        %s268 = scalar_lea.vmem %s1, %s267
        %p269 = pneg %p63
        %p270 = pneg %p60
        %s271 = smul.u32 4, %s16
        %p272 = scmp.lt.s32.totalorder %s271, 7
        %s273 = scalar_select %p272, %s271, 7
        %s274 = scalar_lea.vmem %s2, %s273
        %p275 = pneg %p89
        %p276 = pneg %p86
        %s277 = smul.u32 64, %s16
        %p278 = scmp.lt.s32.totalorder %s277, 127
        %s279 = scalar_select %p278, %s277, 127
        %s280 = smul.addr %s279, 4
        %s281 = scalar_lea.vmem %s3, %s280
        %p282 = pneg %p115
        %p283 = pneg %p112
        %p284 = pneg %p136
        %p285 = pneg %p133
        %p286 = pneg %p157
        %p287 = pneg %p154
        %s288 = smul.u32 4, %s16
        %s289 = smul.u32 4, %s16
        %p290 = scmp.lt.s32.totalorder %s289, 7
        %s291 = scalar_select %p290, %s289, 7
        %s292 = scalar_lea.vmem %s1, %s291
        %s293 = smul.u32 4, %s16
        %s294 = smul.u32 4, %s16
        %p295 = scmp.lt.s32.totalorder %s294, 7
        %s296 = scalar_select %p295, %s294, 7
        %s297 = scalar_lea.vmem %s2, %s296
        %s298 = smul.u32 4, %s16
        %s299 = smul.u32 64, %s16
        %p300 = scmp.lt.s32.totalorder %s299, 127
        %s301 = scalar_select %p300, %s299, 127
        %s302 = smul.addr %s301, 4
        %s303 = scalar_lea.vmem %s3, %s302
        %s304 = smul.u32 64, %s16
        %p306 = scmp.eq.s32.totalorder %s16, 0
        // Predicated region
        $region64: #{neural_admixture_forward.2} parent=58 // pred_check
          %p307 = pneg %p306
        $region65: #{neural_admixture_forward.2} parent=58 // pred_check_branch
          %309 = sbr.rel (%p307) target = $region67
        $region66: #{neural_admixture_forward.2} parent=58 // pred_region
          %vm310 = vcmask 523264
          %311 = vst.msk [vmem:[#allocation2] sm:$0xff] %vm310, 0.0
          %312 = vst.msk [vmem:[#allocation2 + $0x8] sm:$0xff] %vm310, 0.0
        $region67: #{neural_admixture_forward.2} parent=58 // pred_fallthru
          _
        %v313 = vld [vmem:[%s255] sm:$0xff]
        %v314 = vld [vmem:[%s255 + $0x8] sm:$0xff]
        %v315 = vld [vmem:[%s255 + $0x10] sm:$0xff]
        %v316 = vld [vmem:[%s255 + $0x18] sm:$0xff]
        %v317 = vld [vmem:[%s255 + $0x20] sm:$0xff]
        %v318 = vld [vmem:[%s255 + $0x28] sm:$0xff]
        %v319 = vld [vmem:[%s255 + $0x30] sm:$0xff]
        %v320 = vld [vmem:[%s255 + $0x38] sm:$0xff]
        %v321 = vadd.f32 %v313, %v317
        %v322 = vrot.slane %v321, 4
        %v323 = vadd.f32 %v321, %v322
        %v324 = vrot.slane %v323, 2
        %v325 = vadd.f32 %v323, %v324
        %v326 = vrot.slane %v325, 1
        %v327 = vadd.f32 %v325, %v326
        %v328 = vadd.f32 %v314, %v318
        %v329 = vrot.slane %v328, 4
        %v330 = vadd.f32 %v328, %v329
        %v331 = vrot.slane %v330, 2
        %v332 = vadd.f32 %v330, %v331
        %v333 = vrot.slane %v332, 1
        %v334 = vadd.f32 %v332, %v333
        %v335 = vadd.f32 %v315, %v319
        %v336 = vrot.slane %v335, 4
        %v337 = vadd.f32 %v335, %v336
        %v338 = vrot.slane %v337, 2
        %v339 = vadd.f32 %v337, %v338
        %v340 = vrot.slane %v339, 1
        %v341 = vadd.f32 %v339, %v340
        %v342 = vadd.f32 %v316, %v320
        %v343 = vrot.slane %v342, 4
        %v344 = vadd.f32 %v342, %v343
        %v345 = vrot.slane %v344, 2
        %v346 = vadd.f32 %v344, %v345
        %v347 = vrot.slane %v346, 1
        %v348 = vadd.f32 %v346, %v347
        %v349 = vrcp.pop 16.0
        %v350 = vmul.f32 %v327, %v349
        %v351 = vmul.f32 %v334, %v349
        %v352 = vmul.f32 %v341, %v349
        %v353 = vmul.f32 %v348, %v349
        %v354 = vsub.f32 %v313, %v350
        %v355 = vsub.f32 %v314, %v351
        %v356 = vsub.f32 %v315, %v352
        %v357 = vsub.f32 %v316, %v353
        %v358 = vsub.f32 %v317, %v350
        %v359 = vsub.f32 %v318, %v351
        %v360 = vsub.f32 %v319, %v352
        %v361 = vsub.f32 %v320, %v353
        %v362 = vmul.f32 %v354, %v354
        %v363 = vmul.f32 %v355, %v355
        %v364 = vmul.f32 %v356, %v356
        %v365 = vmul.f32 %v357, %v357
        %v366 = vmul.f32 %v358, %v358
        %v367 = vmul.f32 %v359, %v359
        %v368 = vmul.f32 %v360, %v360
        %v369 = vmul.f32 %v361, %v361
        %v370 = vadd.f32 %v362, %v366
        %v371 = vrot.slane %v370, 4
        %v372 = vadd.f32 %v370, %v371
        %v373 = vrot.slane %v372, 2
        %v374 = vadd.f32 %v372, %v373
        %v375 = vrot.slane %v374, 1
        %v376 = vadd.f32 %v374, %v375
        %v377 = vadd.f32 %v363, %v367
        %v378 = vrot.slane %v377, 4
        %v379 = vadd.f32 %v377, %v378
        %v380 = vrot.slane %v379, 2
        %v381 = vadd.f32 %v379, %v380
        %v382 = vrot.slane %v381, 1
        %v383 = vadd.f32 %v381, %v382
        %v384 = vadd.f32 %v364, %v368
        %v385 = vrot.slane %v384, 4
        %v386 = vadd.f32 %v384, %v385
        %v387 = vrot.slane %v386, 2
        %v388 = vadd.f32 %v386, %v387
        %v389 = vrot.slane %v388, 1
        %v390 = vadd.f32 %v388, %v389
        %v391 = vadd.f32 %v365, %v369
        %v392 = vrot.slane %v391, 4
        %v393 = vadd.f32 %v391, %v392
        %v394 = vrot.slane %v393, 2
        %v395 = vadd.f32 %v393, %v394
        %v396 = vrot.slane %v395, 1
        %v397 = vadd.f32 %v395, %v396
        %v398 = vmul.f32 %v376, %v349
        %v399 = vmul.f32 %v383, %v349
        %v400 = vmul.f32 %v390, %v349
        %v401 = vmul.f32 %v397, %v349
        %v402 = vadd.f32 %v398, 1e-05
        %v403 = vadd.f32 %v399, 1e-05
        %v404 = vadd.f32 %v400, 1e-05
        %v405 = vadd.f32 %v401, 1e-05
        %v406 = vrsqrt.pop %v402
        %v407 = vrsqrt.pop %v403
        %v408 = vrsqrt.pop %v404
        %v409 = vrsqrt.pop %v405
        %v410 = vmul.f32 %v354, %v406
        %v411 = vmul.f32 %v355, %v407
        %v412 = vmul.f32 %v356, %v408
        %v413 = vmul.f32 %v357, %v409
        %v414 = vmul.f32 %v358, %v406
        %v415 = vmul.f32 %v359, %v407
        %v416 = vmul.f32 %v360, %v408
        %v417 = vmul.f32 %v361, %v409
        %v418 = vld [vmem:[%s292] sm:$0xf]
        %v420 = vlaneseq
        %v421 = vshrl.u32 %v420, 7
        %v422 = vsub.s32 0, %v421
        %v423 = vrot.slane %v418, %v422
        %v424 = vlaneseq
        %v425 = vshrl.u32 %v424, 7
        %v426 = vsub.s32 1, %v425
        %v427 = vrot.slane %v418, %v426
        %v428 = vlaneseq
        %v429 = vshrl.u32 %v428, 7
        %v430 = vsub.s32 2, %v429
        %v431 = vrot.slane %v418, %v430
        %v432 = vlaneseq
        %v433 = vshrl.u32 %v432, 7
        %v434 = vsub.s32 3, %v433
        %v435 = vrot.slane %v418, %v434
        %v440 = vmul.f32 %v410, %v423
        %v441 = vmul.f32 %v411, %v427
        %v442 = vmul.f32 %v412, %v431
        %v443 = vmul.f32 %v413, %v435
        %v444 = vmul.f32 %v414, %v423
        %v445 = vmul.f32 %v415, %v427
        %v446 = vmul.f32 %v416, %v431
        %v447 = vmul.f32 %v417, %v435
        %v448 = vld [vmem:[%s297] sm:$0xf]
        %v450 = vlaneseq
        %v451 = vshrl.u32 %v450, 7
        %v452 = vsub.s32 0, %v451
        %v453 = vrot.slane %v448, %v452
        %v454 = vlaneseq
        %v455 = vshrl.u32 %v454, 7
        %v456 = vsub.s32 1, %v455
        %v457 = vrot.slane %v448, %v456
        %v458 = vlaneseq
        %v459 = vshrl.u32 %v458, 7
        %v460 = vsub.s32 2, %v459
        %v461 = vrot.slane %v448, %v460
        %v462 = vlaneseq
        %v463 = vshrl.u32 %v462, 7
        %v464 = vsub.s32 3, %v463
        %v465 = vrot.slane %v448, %v464
        %v470 = vadd.f32 %v440, %v453
        %v471 = vadd.f32 %v441, %v457
        %v472 = vadd.f32 %v442, %v461
        %v473 = vadd.f32 %v443, %v465
        %v474 = vadd.f32 %v444, %v453
        %v475 = vadd.f32 %v445, %v457
        %v476 = vadd.f32 %v446, %v461
        %v477 = vadd.f32 %v447, %v465
        %v478 = vld [vmem:[#allocation2] sm:$0xff]
        %v479 = vld [vmem:[#allocation2 + $0x8] sm:$0xff]
        %v480 = vpack.c.bf16 %v474, %v470
        %v481 = vpack.c.bf16 %v475, %v471
        %v482 = vpack.c.bf16 %v476, %v472
        %v483 = vpack.c.bf16 %v477, %v473
        %v484 = vld [vmem:[%s303] sm:$0xf]
        %v485 = vld [vmem:[%s303 + $0x4] sm:$0xf]
        %v486 = vld [vmem:[%s303 + $0x8] sm:$0xf]
        %v487 = vld [vmem:[%s303 + $0xc] sm:$0xf]
        %v488 = vld [vmem:[%s303 + $0x10] sm:$0xf]
        %v489 = vld [vmem:[%s303 + $0x14] sm:$0xf]
        %v490 = vld [vmem:[%s303 + $0x18] sm:$0xf]
        %v491 = vld [vmem:[%s303 + $0x1c] sm:$0xf]
        %v492 = vld [vmem:[%s303 + $0x20] sm:$0xf]
        %v493 = vld [vmem:[%s303 + $0x24] sm:$0xf]
        %v494 = vld [vmem:[%s303 + $0x28] sm:$0xf]
        %v495 = vld [vmem:[%s303 + $0x2c] sm:$0xf]
        %v496 = vld [vmem:[%s303 + $0x30] sm:$0xf]
        %v497 = vld [vmem:[%s303 + $0x34] sm:$0xf]
        %v498 = vld [vmem:[%s303 + $0x38] sm:$0xf]
        %v499 = vld [vmem:[%s303 + $0x3c] sm:$0xf]
        %v500 = vld [vmem:[%s303 + $0x40] sm:$0xf]
        %v501 = vld [vmem:[%s303 + $0x44] sm:$0xf]
        %v502 = vld [vmem:[%s303 + $0x48] sm:$0xf]
        %v503 = vld [vmem:[%s303 + $0x4c] sm:$0xf]
        %v504 = vld [vmem:[%s303 + $0x50] sm:$0xf]
        %v505 = vld [vmem:[%s303 + $0x54] sm:$0xf]
        %v506 = vld [vmem:[%s303 + $0x58] sm:$0xf]
        %v507 = vld [vmem:[%s303 + $0x5c] sm:$0xf]
        %v508 = vld [vmem:[%s303 + $0x60] sm:$0xf]
        %v509 = vld [vmem:[%s303 + $0x64] sm:$0xf]
        %v510 = vld [vmem:[%s303 + $0x68] sm:$0xf]
        %v511 = vld [vmem:[%s303 + $0x6c] sm:$0xf]
        %v512 = vld [vmem:[%s303 + $0x70] sm:$0xf]
        %v513 = vld [vmem:[%s303 + $0x74] sm:$0xf]
        %v514 = vld [vmem:[%s303 + $0x78] sm:$0xf]
        %v515 = vld [vmem:[%s303 + $0x7c] sm:$0xf]
        %v516 = vld [vmem:[%s303 + $0x80] sm:$0xf]
        %v517 = vld [vmem:[%s303 + $0x84] sm:$0xf]
        %v518 = vld [vmem:[%s303 + $0x88] sm:$0xf]
        %v519 = vld [vmem:[%s303 + $0x8c] sm:$0xf]
        %v520 = vld [vmem:[%s303 + $0x90] sm:$0xf]
        %v521 = vld [vmem:[%s303 + $0x94] sm:$0xf]
        %v522 = vld [vmem:[%s303 + $0x98] sm:$0xf]
        %v523 = vld [vmem:[%s303 + $0x9c] sm:$0xf]
        %v524 = vld [vmem:[%s303 + $0xa0] sm:$0xf]
        %v525 = vld [vmem:[%s303 + $0xa4] sm:$0xf]
        %v526 = vld [vmem:[%s303 + $0xa8] sm:$0xf]
        %v527 = vld [vmem:[%s303 + $0xac] sm:$0xf]
        %v528 = vld [vmem:[%s303 + $0xb0] sm:$0xf]
        %v529 = vld [vmem:[%s303 + $0xb4] sm:$0xf]
        %v530 = vld [vmem:[%s303 + $0xb8] sm:$0xf]
        %v531 = vld [vmem:[%s303 + $0xbc] sm:$0xf]
        %v532 = vld [vmem:[%s303 + $0xc0] sm:$0xf]
        %v533 = vld [vmem:[%s303 + $0xc4] sm:$0xf]
        %v534 = vld [vmem:[%s303 + $0xc8] sm:$0xf]
        %v535 = vld [vmem:[%s303 + $0xcc] sm:$0xf]
        %v536 = vld [vmem:[%s303 + $0xd0] sm:$0xf]
        %v537 = vld [vmem:[%s303 + $0xd4] sm:$0xf]
        %v538 = vld [vmem:[%s303 + $0xd8] sm:$0xf]
        %v539 = vld [vmem:[%s303 + $0xdc] sm:$0xf]
        %v540 = vld [vmem:[%s303 + $0xe0] sm:$0xf]
        %v541 = vld [vmem:[%s303 + $0xe4] sm:$0xf]
        %v542 = vld [vmem:[%s303 + $0xe8] sm:$0xf]
        %v543 = vld [vmem:[%s303 + $0xec] sm:$0xf]
        %v544 = vld [vmem:[%s303 + $0xf0] sm:$0xf]
        %v545 = vld [vmem:[%s303 + $0xf4] sm:$0xf]
        %v546 = vld [vmem:[%s303 + $0xf8] sm:$0xf]
        %v547 = vld [vmem:[%s303 + $0xfc] sm:$0xf]
        %v612 = vunpack.c.l.b16 %v484
        %v613 = vunpack.c.l.b16 %v485
        %v614 = vunpack.c.l.b16 %v486
        %v615 = vunpack.c.l.b16 %v487
        %v616 = vunpack.c.l.b16 %v488
        %v617 = vunpack.c.l.b16 %v489
        %v618 = vunpack.c.l.b16 %v490
        %v619 = vunpack.c.l.b16 %v491
        %v620 = vunpack.c.l.b16 %v492
        %v621 = vunpack.c.l.b16 %v493
        %v622 = vunpack.c.l.b16 %v494
        %v623 = vunpack.c.l.b16 %v495
        %v624 = vunpack.c.l.b16 %v496
        %v625 = vunpack.c.l.b16 %v497
        %v626 = vunpack.c.l.b16 %v498
        %v627 = vunpack.c.l.b16 %v499
        %v628 = vunpack.c.l.b16 %v500
        %v629 = vunpack.c.l.b16 %v501
        %v630 = vunpack.c.l.b16 %v502
        %v631 = vunpack.c.l.b16 %v503
        %v632 = vunpack.c.l.b16 %v504
        %v633 = vunpack.c.l.b16 %v505
        %v634 = vunpack.c.l.b16 %v506
        %v635 = vunpack.c.l.b16 %v507
        %v636 = vunpack.c.l.b16 %v508
        %v637 = vunpack.c.l.b16 %v509
        %v638 = vunpack.c.l.b16 %v510
        %v639 = vunpack.c.l.b16 %v511
        %v640 = vunpack.c.l.b16 %v512
        %v641 = vunpack.c.l.b16 %v513
        %v642 = vunpack.c.l.b16 %v514
        %v643 = vunpack.c.l.b16 %v515
        %v644 = vunpack.c.l.b16 %v516
        %v645 = vunpack.c.l.b16 %v517
        %v646 = vunpack.c.l.b16 %v518
        %v647 = vunpack.c.l.b16 %v519
        %v648 = vunpack.c.l.b16 %v520
        %v649 = vunpack.c.l.b16 %v521
        %v650 = vunpack.c.l.b16 %v522
        %v651 = vunpack.c.l.b16 %v523
        %v652 = vunpack.c.l.b16 %v524
        %v653 = vunpack.c.l.b16 %v525
        %v654 = vunpack.c.l.b16 %v526
        %v655 = vunpack.c.l.b16 %v527
        %v656 = vunpack.c.l.b16 %v528
        %v657 = vunpack.c.l.b16 %v529
        %v658 = vunpack.c.l.b16 %v530
        %v659 = vunpack.c.l.b16 %v531
        %v660 = vunpack.c.l.b16 %v532
        %v661 = vunpack.c.l.b16 %v533
        %v662 = vunpack.c.l.b16 %v534
        %v663 = vunpack.c.l.b16 %v535
        %v664 = vunpack.c.l.b16 %v536
        %v665 = vunpack.c.l.b16 %v537
        %v666 = vunpack.c.l.b16 %v538
        %v667 = vunpack.c.l.b16 %v539
        %v668 = vunpack.c.l.b16 %v540
        %v669 = vunpack.c.l.b16 %v541
        %v670 = vunpack.c.l.b16 %v542
        %v671 = vunpack.c.l.b16 %v543
        %v672 = vunpack.c.l.b16 %v544
        %v673 = vunpack.c.l.b16 %v545
        %v674 = vunpack.c.l.b16 %v546
        %v675 = vunpack.c.l.b16 %v547
        %v676 = vpack.c.b16 %v613, %v612
        %v677 = vpack.c.b16 %v615, %v614
        %v678 = vpack.c.b16 %v617, %v616
        %v679 = vpack.c.b16 %v619, %v618
        %v680 = vpack.c.b16 %v621, %v620
        %v681 = vpack.c.b16 %v623, %v622
        %v682 = vpack.c.b16 %v625, %v624
        %v683 = vpack.c.b16 %v627, %v626
        %v684 = vpack.c.b16 %v629, %v628
        %v685 = vpack.c.b16 %v631, %v630
        %v686 = vpack.c.b16 %v633, %v632
        %v687 = vpack.c.b16 %v635, %v634
        %v688 = vpack.c.b16 %v637, %v636
        %v689 = vpack.c.b16 %v639, %v638
        %v690 = vpack.c.b16 %v641, %v640
        %v691 = vpack.c.b16 %v643, %v642
        %v692 = vpack.c.b16 %v645, %v644
        %v693 = vpack.c.b16 %v647, %v646
        %v694 = vpack.c.b16 %v649, %v648
        %v695 = vpack.c.b16 %v651, %v650
        %v696 = vpack.c.b16 %v653, %v652
        %v697 = vpack.c.b16 %v655, %v654
        %v698 = vpack.c.b16 %v657, %v656
        %v699 = vpack.c.b16 %v659, %v658
        %v700 = vpack.c.b16 %v661, %v660
        %v701 = vpack.c.b16 %v663, %v662
        %v702 = vpack.c.b16 %v665, %v664
        %v703 = vpack.c.b16 %v667, %v666
        %v704 = vpack.c.b16 %v669, %v668
        %v705 = vpack.c.b16 %v671, %v670
        %v706 = vpack.c.b16 %v673, %v672
        %v707 = vpack.c.b16 %v675, %v674
        %740 = vmatprep.subr.bf16.mxu0 0
        %741 = vmatpush1.bf16.msra.mxu0 %v676
        %742 = vmatprep.subr.bf16.mxu0 0
        %743 = vmatpush1.bf16.msra.mxu0 %v677
        %744 = vmatprep.subr.bf16.mxu0 0
        %745 = vmatpush1.bf16.msra.mxu0 %v678
        %746 = vmatprep.subr.bf16.mxu0 0
        %747 = vmatpush1.bf16.msra.mxu0 %v679
        %748 = vmatprep.subr.bf16.mxu0 0
        %749 = vmatpush1.bf16.msra.mxu0 %v680
        %750 = vmatprep.subr.bf16.mxu0 0
        %751 = vmatpush1.bf16.msra.mxu0 %v681
        %752 = vmatprep.subr.bf16.mxu0 0
        %753 = vmatpush1.bf16.msra.mxu0 %v682
        %754 = vmatprep.subr.bf16.mxu0 0
        %755 = vmatpush1.bf16.msra.mxu0 %v683
        %756 = vmatprep.subr.bf16.mxu0 0
        %757 = vmatpush1.bf16.msra.mxu0 %v684
        %758 = vmatprep.subr.bf16.mxu0 0
        %759 = vmatpush1.bf16.msra.mxu0 %v685
        %760 = vmatprep.subr.bf16.mxu0 0
        %761 = vmatpush1.bf16.msra.mxu0 %v686
        %762 = vmatprep.subr.bf16.mxu0 0
        %763 = vmatpush1.bf16.msra.mxu0 %v687
        %764 = vmatprep.subr.bf16.mxu0 0
        %765 = vmatpush1.bf16.msra.mxu0 %v688
        %766 = vmatprep.subr.bf16.mxu0 0
        %767 = vmatpush1.bf16.msra.mxu0 %v689
        %768 = vmatprep.subr.bf16.mxu0 0
        %769 = vmatpush1.bf16.msra.mxu0 %v690
        %770 = vmatprep.subr.bf16.mxu0 0
        %771 = vmatpush1.bf16.msra.mxu0 %v691
        %772 = vmatprep.mubr.bf16.mxu0 %v481
        %773 = vmatmul.mubr.bf16.gmra.mrb[0].mxu0 %v480
        %v774 = vpop.f32.mrb[0].mxu0
        %v775 = vadd.f32 0.0, %v774
        %v776 = vpop.f32.mrb[0].mxu0
        %v777 = vpop.f32.mrb[0].mxu0
        %v778 = vadd.f32 0.0, %v777
        %v779 = vpop.f32.mrb[0].mxu0
        %780 = vdwg.mxu0
        %781 = vmatprep.subr.bf16.mxu0 0
        %782 = vmatpush1.bf16.msra.mxu0 %v692
        %783 = vmatprep.subr.bf16.mxu0 0
        %784 = vmatpush1.bf16.msra.mxu0 %v693
        %785 = vmatprep.subr.bf16.mxu0 0
        %786 = vmatpush1.bf16.msra.mxu0 %v694
        %787 = vmatprep.subr.bf16.mxu0 0
        %788 = vmatpush1.bf16.msra.mxu0 %v695
        %789 = vmatprep.subr.bf16.mxu0 0
        %790 = vmatpush1.bf16.msra.mxu0 %v696
        %791 = vmatprep.subr.bf16.mxu0 0
        %792 = vmatpush1.bf16.msra.mxu0 %v697
        %793 = vmatprep.subr.bf16.mxu0 0
        %794 = vmatpush1.bf16.msra.mxu0 %v698
        %795 = vmatprep.subr.bf16.mxu0 0
        %796 = vmatpush1.bf16.msra.mxu0 %v699
        %797 = vmatprep.subr.bf16.mxu0 0
        %798 = vmatpush1.bf16.msra.mxu0 %v700
        %799 = vmatprep.subr.bf16.mxu0 0
        %800 = vmatpush1.bf16.msra.mxu0 %v701
        %801 = vmatprep.subr.bf16.mxu0 0
        %802 = vmatpush1.bf16.msra.mxu0 %v702
        %803 = vmatprep.subr.bf16.mxu0 0
        %804 = vmatpush1.bf16.msra.mxu0 %v703
        %805 = vmatprep.subr.bf16.mxu0 0
        %806 = vmatpush1.bf16.msra.mxu0 %v704
        %807 = vmatprep.subr.bf16.mxu0 0
        %808 = vmatpush1.bf16.msra.mxu0 %v705
        %809 = vmatprep.subr.bf16.mxu0 0
        %810 = vmatpush1.bf16.msra.mxu0 %v706
        %811 = vmatprep.subr.bf16.mxu0 0
        %812 = vmatpush1.bf16.msra.mxu0 %v707
        %813 = vmatprep.mubr.bf16.mxu0 %v483
        %814 = vmatmul.mubr.bf16.gmra.mrb[0].mxu0 %v482
        %v815 = vpop.f32.mrb[0].mxu0
        %v816 = vadd.f32 %v775, %v815
        %v817 = vpop.f32.mrb[0].mxu0
        %v818 = vpop.f32.mrb[0].mxu0
        %v819 = vadd.f32 %v778, %v818
        %v820 = vpop.f32.mrb[0].mxu0
        %821 = vdwg.mxu0
        %v822 = vadd.f32 %v478, %v816
        %v823 = vadd.f32 %v479, %v819
        %vm824 = vcmask 523264
        %825 = vst.msk [vmem:[#allocation2] sm:$0xff] %vm824, %v822
        %826 = vst.msk [vmem:[#allocation2 + $0x8] sm:$0xff] %vm824, %v823
        %p827 = scmp.eq.s32.totalorder %s16, 1
        // Predicated region
        $region68: #{neural_admixture_forward.2} parent=58 // pred_check
          %p828 = pneg %p827
        $region69: #{neural_admixture_forward.2} parent=58 // pred_check_branch
          %830 = sbr.rel (%p828) target = $region71
        $region70: #{neural_admixture_forward.2} parent=58 // pred_region
          %v831 = vld [vmem:[#allocation2] sm:$0xff]
          %v832 = vld [vmem:[#allocation2 + $0x8] sm:$0xff]
          %v833 = vld [vmem:[%s4] sm:$0x1]
          %v835 = vlaneseq
          %v836 = vshrl.u32 %v835, 7
          %v837 = vsub.s32 0, %v836
          %v838 = vrot.slane %v833, %v837
          %v840 = vadd.f32 %v831, %v838
          %v841 = vadd.f32 %v832, %v838
          %v842 = vmul.f32 %v840, 0.5
          %v843 = vmul.f32 %v841, 0.5
          %v844 = vmul.f32 %v840, 0.70710677
          %v845 = vmul.f32 %v841, 0.70710677
          %v846 = verf.f32.pop %v844
          %v847 = verf.f32.pop %v845
          %v848 = vadd.f32 %v846, 1.0
          %v849 = vadd.f32 %v847, 1.0
          %v850 = vmul.f32 %v842, %v848
          %v851 = vmul.f32 %v843, %v849
          %852 = vst.msk [vmem:[%s5] sm:$0xff] %vm824, %v850
          %853 = vst.msk [vmem:[%s5 + $0x8] sm:$0xff] %vm824, %v851
        $region71: #{neural_admixture_forward.2} parent=58 // pred_fallthru
          _
        // Predicated region
        $region72: #{neural_admixture_forward.2} parent=58 // pred_check
          %p854 = pneg %p154
        $region73: #{neural_admixture_forward.2} parent=58 // pred_check_branch
          %856 = sbr.rel (%p854) target = $region75
        $region74: #{neural_admixture_forward.2} parent=58 // pred_region
          _
        $region75: #{neural_admixture_forward.2} parent=58 // pred_fallthru
          _
        // Predicated region
        $region76: #{neural_admixture_forward.2} parent=58 // pred_check
          %p857 = pneg %p154
        $region77: #{neural_admixture_forward.2} parent=58 // pred_check_branch
          %859 = sbr.rel (%p857) target = $region79
        $region78: #{neural_admixture_forward.2} parent=58 // pred_region
          _
        $region79: #{neural_admixture_forward.2} parent=58 // pred_fallthru
          _
      $region59: #{neural_admixture_forward.2} parent=5 // pred_fallthru
        _
      %p860 = scmp.le.s32.totalorder 2, %s11
      // Predicated region
      $region80: #{neural_admixture_forward.2} parent=5 // pred_check
        %p861 = pneg %p860
      $region81: #{neural_admixture_forward.2} parent=5 // pred_check_branch
        %863 = sbr.rel (%p861) target = $region83
      $region82: #{neural_admixture_forward.2} parent=5 // pred_region
        %s864 = ssub.s32 %s11, 2
      $region83: #{neural_admixture_forward.2} parent=5 // pred_fallthru
        _
    $region6: #{neural_admixture_forward.2} parent=1 // loop_footer
      %s15 = sadd.s32 1, %s11
    $region7: #{neural_admixture_forward.2} parent=1 // loop_footer_branch
      %10 = sbr.rel target = $region3
    $region8: #{neural_admixture_forward.2} parent=1 // loop_exit
      _

</llo_original>
